<compile_context>
chip_gen: v5e
topology: v5e:2x2
jax: 0.10.0
libtpu: 0.0.40
codegen_flags: <defaults>
</compile_context>

<pallas_src>
import functools
import math

import jax
import jax.numpy as jnp
from jax.experimental import pallas as pl
from jax.experimental.pallas import tpu as pltpu


def _gaussian_rbf_kernel(x_ref, expand_ref, off_ref, coeff_ref, o_ref, *,
                         n_terms):
    # x_ref:      (TR, G)        f32 inputs, G points per lane-dense output row
    # expand_ref: (G, G*n_rbf)   bf16 0/1 matrix: lane c picks x column c//n_rbf
    # off_ref:    (1, G*n_rbf)   f32 offsets tiled G times
    # coeff_ref:  (1, G*n_rbf)   f32 (-0.5/widths^2) tiled G times
    # o_ref:      (TR, G*n_rbf)  lane-dense output block
    x = x_ref[...]
    e = expand_ref[...]

    # Split x into bf16-exact terms so the MXU lane-expansion reproduces x
    # (E is 0/1, so every bf16 x bf16 pass is exact).  3 terms -> ~1 ulp(f32);
    # 2 terms (bf16 output) -> residual far below bf16 output ulp.
    hi = x.astype(jnp.bfloat16)
    r1 = x - hi.astype(jnp.float32)
    mid = r1.astype(jnp.bfloat16)
    x_exp = (jnp.dot(hi, e, preferred_element_type=jnp.float32)
             + jnp.dot(mid, e, preferred_element_type=jnp.float32))
    if n_terms >= 3:
        lo = (r1 - mid.astype(jnp.float32)).astype(jnp.bfloat16)
        x_exp = x_exp + jnp.dot(lo, e, preferred_element_type=jnp.float32)

    diff = x_exp - off_ref[...]                      # (TR, G*n_rbf)
    o_ref[...] = jnp.exp(coeff_ref[...] * (diff * diff)).astype(o_ref.dtype)


def gaussian_rbf_params(n_rbf: int, cutoff: float, start: float = 0.0):
    """Deterministic init matching GaussianRBF.__init__ (no concentrated_at)."""
    # TODO(synk): concentrated_at/concentrated_spacing init variant not
    # reproduced here (init-time option only; the kernel works with any
    # offsets/widths passed in).
    offset = jnp.linspace(start, cutoff, n_rbf, dtype=jnp.float32)
    center = (start + cutoff) / 2.0
    widths = (jnp.abs(offset - center) / (cutoff - start) + 1.0) ** 2 / 4.0
    widths = widths * jnp.ones_like(offset)
    return offset, widths


def gaussian_rbf(inputs: jax.Array, offsets: jax.Array, widths: jax.Array,
                 *, out_dtype=jnp.float32) -> jax.Array:
    n_rbf = int(offsets.shape[0])
    orig_shape = inputs.shape
    x_flat = inputs.reshape(-1).astype(jnp.float32)
    m = x_flat.shape[0]
    out_itemsize = jnp.dtype(out_dtype).itemsize

    # --- grouping factor G: G*n_rbf is a multiple of 128, G up to 128,
    #     preferring a divisor of M so no pad + post-slice copy is needed. ---
    l_min = 128 // math.gcd(n_rbf, 128)
    g_max = max(l_min, (min(128, max(1, 4096 // n_rbf)) // l_min) * l_min)
    g = g_max
    if m % g != 0:
        divisors = [c for c in range(l_min, g_max + 1, l_min) if m % c == 0]
        if divisors:
            g = max(divisors)
    lanes = g * n_rbf

    m_pad = ((m + g - 1) // g) * g       # no-op whenever a divisor was found
    if m_pad != m:
        x_flat = jnp.pad(x_flat, (0, m_pad - m))
    rows = m_pad // g
    x2 = x_flat.reshape(rows, g)

    offsets = offsets.astype(jnp.float32)
    coeff = -0.5 / (widths.astype(jnp.float32) ** 2)     # precomputed once
    off_tiled = jnp.tile(offsets, g).reshape(1, lanes)
    coeff_tiled = jnp.tile(coeff, g).reshape(1, lanes)

    # 0/1 expansion matrix: (x @ expand)[:, j*n_rbf + k] == x[:, j]
    expand = (jnp.arange(lanes)[None, :] // n_rbf
              == jnp.arange(g)[:, None]).astype(jnp.bfloat16)

    # --- row tile: ~4 MiB output blocks, double-buffered footprint <= ~12 MiB
    #     (fits v5e's 16 MiB default scoped VMEM); keep >=2 grid steps when
    #     possible so both v7x TensorCores get work.  Row granularity follows
    #     the packed sublane tile of the output dtype. ---
    sub = 8 * max(1, 4 // out_itemsize)
    if rows <= sub:
        tr = rows                                    # full-dim block
    else:
        tr = (4 << 20) // (lanes * out_itemsize)     # ~4 MiB output block
        const_bytes = 2 * (g * lanes * 2 + 2 * (lanes * 4))
        per_row = 2 * (lanes * out_itemsize + g * 4)
        tr = min(tr, max(sub, ((12 << 20) - const_bytes) // per_row))
        tr = min(tr, (-(-((rows + 1) // 2) // sub)) * sub)   # >= 2 grid steps
        tr = min(tr, (rows // sub) * sub)            # block never exceeds array
        tr = max(sub, (tr // sub) * sub)
    grid = (pl.cdiv(rows, tr),)

    n_terms = 3 if out_itemsize >= 4 else 2
    kernel = functools.partial(_gaussian_rbf_kernel, n_terms=n_terms)

    cost = pl.CostEstimate(
        flops=2 * rows * g * lanes * n_terms + 3 * rows * lanes,
        transcendentals=rows * lanes,
        bytes_accessed=(rows * g * 4 + rows * lanes * out_itemsize
                        + g * lanes * 2 + 2 * lanes * 4),
    )

    out = pl.pallas_call(
        kernel,
        out_shape=jax.ShapeDtypeStruct((rows, lanes), out_dtype),
        grid_spec=pltpu.PrefetchScalarGridSpec(
            num_scalar_prefetch=0,
            grid=grid,
            in_specs=[
                pl.BlockSpec((tr, g), lambda i: (i, 0)),
                pl.BlockSpec((g, lanes), lambda i: (0, 0)),
                pl.BlockSpec((1, lanes), lambda i: (0, 0)),
                pl.BlockSpec((1, lanes), lambda i: (0, 0)),
            ],
            out_specs=pl.BlockSpec((tr, lanes), lambda i: (i, 0)),
        ),
        compiler_params=pltpu.CompilerParams(
            dimension_semantics=("parallel",)),
        cost_estimate=cost,
    )(x2, expand, off_tiled, coeff_tiled)

    out = out.reshape(m_pad, n_rbf)      # free reshape (same row-major bytes)
    if m_pad != m:
        # TODO(synk): this slice materializes a full copy of the result; it
        # only triggers when no grouping factor divides inputs.size.
        out = out[:m]
    return out.reshape(*orig_shape, n_rbf)


if __name__ == "__main__":
    n_rbf = 16
    cutoff = 5.0
    start = 0.0

    offsets, widths = gaussian_rbf_params(n_rbf, cutoff, start)

    key = jax.random.PRNGKey(0)
    x = jax.random.uniform(key, (2, 4, 16, 16), dtype=jnp.float32,
                           minval=0.0, maxval=cutoff)

    # plain-JAX reference
    coeff = -0.5 / widths ** 2
    y_ref = jnp.exp(coeff * (x[..., None] - offsets) ** 2)

    # Exact (float32) path -- matches the PyTorch module numerics.
    y = jax.block_until_ready(gaussian_rbf(x, offsets, widths))
    assert y.shape == (2, 4, 16, 16, n_rbf)
    assert jnp.allclose(y, y_ref, atol=1e-5, rtol=1e-5)

    # Recommended fast path: bf16 output halves HBM writeback (the kernel is
    # writeback-bound); tolerance is bf16 output ulp, not 1e-5.
    y_bf16 = jax.block_until_ready(
        gaussian_rbf(x, offsets, widths, out_dtype=jnp.bfloat16))
    assert y_bf16.dtype == jnp.bfloat16
    assert jnp.allclose(y_bf16.astype(jnp.float32), y_ref, atol=2e-2, rtol=2e-2)

    print("KERNEL_OK")
</pallas_src>

<mosaic_0001>
module attributes {stable_mosaic.version = 11 : i64} {
  func.func @_gaussian_rbf_kernel(%arg0: i32, %arg1: memref<8x128xf32, #tpu.memory_space<vmem>>, %arg2: memref<128x2048xbf16, #tpu.memory_space<vmem>>, %arg3: memref<1x2048xf32, #tpu.memory_space<vmem>>, %arg4: memref<1x2048xf32, #tpu.memory_space<vmem>>, %arg5: memref<8x2048xf32, #tpu.memory_space<vmem>>) attributes {dimension_semantics = [#tpu.dimension_semantics<parallel>], iteration_bounds = array<i64: 2>, scalar_prefetch = 0 : i64, scratch_operands = 0 : i64, tpu.core_type = #tpu.core_type<tc>, window_params = [{transform_indices = @transform_0, window_bounds = array<i64: 8, 128>}, {pipeline_mode = #tpu.pipeline_mode<synchronous>, transform_indices = @transform_1, window_bounds = array<i64: 128, 2048>}, {pipeline_mode = #tpu.pipeline_mode<synchronous>, transform_indices = @transform_2, window_bounds = array<i64: 1, 2048>}, {pipeline_mode = #tpu.pipeline_mode<synchronous>, transform_indices = @transform_3, window_bounds = array<i64: 1, 2048>}, {transform_indices = @transform_4, window_bounds = array<i64: 8, 2048>}]} {
    %c0 = arith.constant 0 : index
    %c0_0 = arith.constant 0 : index
    %0 = vector.load %arg1[%c0, %c0_0] : memref<8x128xf32, #tpu.memory_space<vmem>>, vector<8x128xf32>
    %c0_1 = arith.constant 0 : index
    %c0_2 = arith.constant 0 : index
    %1 = vector.load %arg2[%c0_1, %c0_2] : memref<128x2048xbf16, #tpu.memory_space<vmem>>, vector<128x2048xbf16>
    %2 = arith.truncf %0 : vector<8x128xf32> to vector<8x128xbf16>
    %3 = arith.extf %2 : vector<8x128xbf16> to vector<8x128xf32>
    %4 = arith.subf %0, %3 : vector<8x128xf32>
    %5 = arith.truncf %4 : vector<8x128xf32> to vector<8x128xbf16>
    %cst = arith.constant dense<0.000000e+00> : vector<8x2048xf32>
    %6 = tpu.matmul %2, %1, %cst {dimension_numbers = #tpu.dot_dimension_numbers<[1], [0], [0], [1], [0, 0, 1, 1], [], []>} : vector<8x128xbf16>, vector<128x2048xbf16>, vector<8x2048xf32> -> vector<8x2048xf32>
    %cst_3 = arith.constant dense<0.000000e+00> : vector<8x2048xf32>
    %7 = tpu.matmul %5, %1, %cst_3 {dimension_numbers = #tpu.dot_dimension_numbers<[1], [0], [0], [1], [0, 0, 1, 1], [], []>} : vector<8x128xbf16>, vector<128x2048xbf16>, vector<8x2048xf32> -> vector<8x2048xf32>
    %8 = arith.addf %6, %7 : vector<8x2048xf32>
    %9 = arith.extf %5 : vector<8x128xbf16> to vector<8x128xf32>
    %10 = arith.subf %4, %9 : vector<8x128xf32>
    %11 = arith.truncf %10 : vector<8x128xf32> to vector<8x128xbf16>
    %cst_4 = arith.constant dense<0.000000e+00> : vector<8x2048xf32>
    %12 = tpu.matmul %11, %1, %cst_4 {dimension_numbers = #tpu.dot_dimension_numbers<[1], [0], [0], [1], [0, 0, 1, 1], [], []>} : vector<8x128xbf16>, vector<128x2048xbf16>, vector<8x2048xf32> -> vector<8x2048xf32>
    %13 = arith.addf %8, %12 : vector<8x2048xf32>
    %c0_5 = arith.constant 0 : index
    %c0_6 = arith.constant 0 : index
    %14 = vector.load %arg3[%c0_5, %c0_6] : memref<1x2048xf32, #tpu.memory_space<vmem>>, vector<1x2048xf32>
    %15 = vector.broadcast %14 : vector<1x2048xf32> to vector<8x2048xf32>
    %16 = arith.subf %13, %15 : vector<8x2048xf32>
    %c0_7 = arith.constant 0 : index
    %c0_8 = arith.constant 0 : index
    %17 = vector.load %arg4[%c0_7, %c0_8] : memref<1x2048xf32, #tpu.memory_space<vmem>>, vector<1x2048xf32>
    %18 = arith.mulf %16, %16 : vector<8x2048xf32>
    %19 = vector.broadcast %17 : vector<1x2048xf32> to vector<8x2048xf32>
    %20 = arith.mulf %19, %18 : vector<8x2048xf32>
    %21 = math.exp %20 : vector<8x2048xf32>
    %c0_9 = arith.constant 0 : index
    %c0_10 = arith.constant 0 : index
    %22 = vector.load %arg5[%c0_9, %c0_10] : memref<8x2048xf32, #tpu.memory_space<vmem>>, vector<8x2048xf32>
    tpu.vector_store %arg5[%c0_9, %c0_10], %21 {strides = array<i32>} : memref<8x2048xf32, #tpu.memory_space<vmem>>, vector<8x2048xf32>,
    return
  }
  func.func @transform_0(%arg0: i32) -> (i32, i32) {
    %c0_i32 = arith.constant 0 : i32
    %c0_i32_0 = arith.constant 0 : i32
    return %arg0, %c0_i32 : i32, i32
  }
  func.func @transform_1(%arg0: i32) -> (i32, i32) {
    %c0_i32 = arith.constant 0 : i32
    %c0_i32_0 = arith.constant 0 : i32
    %c0_i32_1 = arith.constant 0 : i32
    return %c0_i32, %c0_i32_0 : i32, i32
  }
  func.func @transform_2(%arg0: i32) -> (i32, i32) {
    %c0_i32 = arith.constant 0 : i32
    %c0_i32_0 = arith.constant 0 : i32
    %c0_i32_1 = arith.constant 0 : i32
    return %c0_i32, %c0_i32_0 : i32, i32
  }
  func.func @transform_3(%arg0: i32) -> (i32, i32) {
    %c0_i32 = arith.constant 0 : i32
    %c0_i32_0 = arith.constant 0 : i32
    %c0_i32_1 = arith.constant 0 : i32
    return %c0_i32, %c0_i32_0 : i32, i32
  }
  func.func @transform_4(%arg0: i32) -> (i32, i32) {
    %c0_i32 = arith.constant 0 : i32
    %c0_i32_0 = arith.constant 0 : i32
    return %arg0, %c0_i32 : i32, i32
  }
}

</mosaic_0001>

<llo_original>
// kernel: tpu_custom_call.1
$region0: #{tpu_custom_call.1}
  #allocation0 [shape = 'u32[]', space=smem, size = 0x4, offset = 0x4, fixed_abs, tag = 'smem constant byte address 0x4 - core index']
  #allocation1 [shape = 'u32[72,128]{1,0:T(1,128)}', space=vmem, size = 0x9000, scoped, tag = 'internal scratch']
  %s0 = inlined_call_operand.hbm [shape: f32[16,128], index: 0, kind: input, shape index: {}]
  %s1 = inlined_call_operand.hbm [shape: bf16[128,2048], index: 1, kind: input, shape index: {}]
  %s2 = inlined_call_operand.hbm [shape: f32[1,2048], index: 2, kind: input, shape index: {}]
  %s3 = inlined_call_operand.hbm [shape: f32[1,2048], index: 3, kind: input, shape index: {}]
  %s4 = inlined_call_operand.hbm [shape: f32[16,2048], index: 4, kind: output, shape index: {}]
  %s5 = sld [smem:[#allocation0]]
  $region65: #{tpu_custom_call.1} parent=0
    _
  %s7 = ssub.s32 1, %s5
  %s8 = scalar_select 0, %s7, %s5
  $region1: #{tpu_custom_call.1} parent=0
    #allocation2 [shape = 'u8[8192]{0}', space=vmem, size = 0x2000, scoped, tag = 'input window, operand 0']
    #allocation3 [shape = 's32[2]{0}', space=sflag, size = 0x8, scoped, tag = 'scoped memory for tpu_custom_call.1']
    #allocation4 [shape = 's32[2]{0}', space=sflag, size = 0x8, scoped, tag = 'scoped memory for tpu_custom_call.1']
    #allocation5 [shape = 'u8[524288]{0}', space=vmem, size = 0x80000, scoped, tag = 'input window, operand 1, single buffered']
    #allocation6 [shape = 's32[1]{0}', space=sflag, size = 0x4, scoped, tag = 'scoped memory for tpu_custom_call.1']
    #allocation7 [shape = 'u8[8192]{0}', space=vmem, size = 0x2000, scoped, tag = 'input window, operand 2, single buffered']
    #allocation8 [shape = 'u8[8192]{0}', space=vmem, size = 0x2000, scoped, tag = 'input window, operand 3, single buffered']
    #allocation9 [shape = 's32[1]{0}', space=sflag, size = 0x4, scoped, tag = 'scoped memory for tpu_custom_call.1']
    #allocation10 [shape = 'u8[131072]{0}', space=vmem, size = 0x20000, scoped, tag = 'output window, operand 0']
    %9 = vsyncpa [#allocation3], 0
    %s10 = scalar_lea.sflag [#allocation3], 1
    %11 = vsyncpa %s10, 0
    %12 = vsyncpa [#allocation6], 0
    %13 = vsyncpa [#allocation9], 0
    %14 = vsyncpa [#allocation4], 0
    %s15 = scalar_lea.sflag [#allocation4], 1
    %16 = vsyncpa %s15, 0
    loop: start=0, step=1, limit=4
    $region2: #{tpu_custom_call.1} parent=1 // loop_pre_header
      _
    $region3: #{tpu_custom_call.1} parent=1 // loop_header
      %s18 = sphi 0, %s22
      %p19 = scmp.ge.s32.totalorder %s18, 4
      %s28 = sphi 0, %s30
      %s31 = sphi 0, %s28
      %s32 = sphi 0, %s31
      %s48 = sphi 0, %s32
      %s52 = sphi 0, %s52
      %s54 = sphi 0, %s52
      %s55 = sphi 0, %s54
      %s69 = sphi 0, %s55
      %s73 = sphi 0, %s73
      %s75 = sphi 0, %s73
      %s76 = sphi 0, %s75
      %s90 = sphi 0, %s76
      %s94 = sphi 0, %s94
      %s96 = sphi 0, %s94
      %s97 = sphi 0, %s96
      %s111 = sphi 0, %s97
      %s117 = sphi 0, %s119
      %s120 = sphi 0, %s117
      %s121 = sphi 0, %s120
      %s137 = sphi 0, %s121
    $region4: #{tpu_custom_call.1} parent=1 // loop_header_branch
      %21 = sbr.rel (%p19) target = $region8
    $region5: #{tpu_custom_call.1} parent=1 // loop_body
      %s23 = ssub.s32 %s18, 1
      %s24 = ssub.s32 %s18, 2
      %s25 = sadd.s32 %s18, 1
      %s26 = ssub.s32 %s18, %s25
      %p27 = scmp.eq.s32.totalorder %s26, 0
      %s29 = sadd.s32 %s28, 1
      %s30 = scalar_select %p27, %s28, %s29
      %p33 = pneg %p27
      %p34 = scmp.eq.s32.totalorder %s18, 1
      %p35 = por %p33, %p34
      %p36 = scmp.ne.s32.totalorder %s28, %s31
      %p37 = scmp.eq.s32.totalorder %s18, 0
      %p38 = por %p36, %p37
      %p39 = scmp.ne.s32.totalorder %s28, %s31
      %p40 = scmp.eq.s32.totalorder %s23, 1
      %p41 = por %p39, %p40
      %p42 = scmp.ne.s32.totalorder %s31, %s32
      %p43 = scmp.eq.s32.totalorder %s23, 0
      %p44 = por %p42, %p43
      %p45 = scmp.ne.s32.totalorder %s31, %s32
      %p46 = scmp.eq.s32.totalorder %s24, 1
      %p47 = por %p45, %p46
      %p49 = scmp.ne.s32.totalorder %s32, %s48
      %p50 = scmp.eq.s32.totalorder %s24, 0
      %p51 = por %p49, %p50
      %s53 = sadd.s32 %s52, 1
      %p56 = scmp.eq.s32.totalorder %s18, 1
      %p57 = scmp.ne.s32.totalorder %s52, %s54
      %p58 = scmp.eq.s32.totalorder %s18, 0
      %p59 = por %p57, %p58
      %p60 = scmp.ne.s32.totalorder %s52, %s54
      %p61 = scmp.eq.s32.totalorder %s23, 1
      %p62 = por %p60, %p61
      %p63 = scmp.ne.s32.totalorder %s54, %s55
      %p64 = scmp.eq.s32.totalorder %s23, 0
      %p65 = por %p63, %p64
      %p66 = scmp.ne.s32.totalorder %s54, %s55
      %p67 = scmp.eq.s32.totalorder %s24, 1
      %p68 = por %p66, %p67
      %p70 = scmp.ne.s32.totalorder %s55, %s69
      %p71 = scmp.eq.s32.totalorder %s24, 0
      %p72 = por %p70, %p71
      %s74 = sadd.s32 %s73, 1
      %p77 = scmp.eq.s32.totalorder %s18, 1
      %p78 = scmp.ne.s32.totalorder %s73, %s75
      %p79 = scmp.eq.s32.totalorder %s18, 0
      %p80 = por %p78, %p79
      %p81 = scmp.ne.s32.totalorder %s73, %s75
      %p82 = scmp.eq.s32.totalorder %s23, 1
      %p83 = por %p81, %p82
      %p84 = scmp.ne.s32.totalorder %s75, %s76
      %p85 = scmp.eq.s32.totalorder %s23, 0
      %p86 = por %p84, %p85
      %p87 = scmp.ne.s32.totalorder %s75, %s76
      %p88 = scmp.eq.s32.totalorder %s24, 1
      %p89 = por %p87, %p88
      %p91 = scmp.ne.s32.totalorder %s76, %s90
      %p92 = scmp.eq.s32.totalorder %s24, 0
      %p93 = por %p91, %p92
      %s95 = sadd.s32 %s94, 1
      %p98 = scmp.eq.s32.totalorder %s18, 1
      %p99 = scmp.ne.s32.totalorder %s94, %s96
      %p100 = scmp.eq.s32.totalorder %s18, 0
      %p101 = por %p99, %p100
      %p102 = scmp.ne.s32.totalorder %s94, %s96
      %p103 = scmp.eq.s32.totalorder %s23, 1
      %p104 = por %p102, %p103
      %p105 = scmp.ne.s32.totalorder %s96, %s97
      %p106 = scmp.eq.s32.totalorder %s23, 0
      %p107 = por %p105, %p106
      %p108 = scmp.ne.s32.totalorder %s96, %s97
      %p109 = scmp.eq.s32.totalorder %s24, 1
      %p110 = por %p108, %p109
      %p112 = scmp.ne.s32.totalorder %s97, %s111
      %p113 = scmp.eq.s32.totalorder %s24, 0
      %p114 = por %p112, %p113
      %s115 = ssub.s32 %s18, %s25
      %p116 = scmp.eq.s32.totalorder %s115, 0
      %s118 = sadd.s32 %s117, 1
      %s119 = scalar_select %p116, %s117, %s118
      %p122 = pneg %p116
      %p123 = scmp.eq.s32.totalorder %s18, 1
      %p124 = por %p122, %p123
      %p125 = scmp.ne.s32.totalorder %s117, %s120
      %p126 = scmp.eq.s32.totalorder %s18, 0
      %p127 = por %p125, %p126
      %p128 = scmp.ne.s32.totalorder %s117, %s120
      %p129 = scmp.eq.s32.totalorder %s23, 1
      %p130 = por %p128, %p129
      %p131 = scmp.ne.s32.totalorder %s120, %s121
      %p132 = scmp.eq.s32.totalorder %s23, 0
      %p133 = por %p131, %p132
      %p134 = scmp.ne.s32.totalorder %s120, %s121
      %p135 = scmp.eq.s32.totalorder %s24, 1
      %p136 = por %p134, %p135
      %p138 = scmp.ne.s32.totalorder %s121, %s137
      %p139 = scmp.eq.s32.totalorder %s24, 0
      %p140 = por %p138, %p139
      %p141 = scmp.le.s32.totalorder 1, %s18
      %p142 = scmp.lt.s32.totalorder %s18, 3
      %p143 = pnand %p141, %p142
      %p144 = pneg %p143
      // Predicated region
      $region9: #{tpu_custom_call.1} parent=5 // pred_check
        _
      $region10: #{tpu_custom_call.1} parent=5 // pred_check_branch
        %146 = sbr.rel (%p143) target = $region12
      $region11: #{tpu_custom_call.1} parent=5 // pred_region
        %s147 = ssub.s32 %s18, 1
        // Predicated region
        $region13: #{tpu_custom_call.1} parent=11 // pred_check
          %p148 = pneg %p65
        $region14: #{tpu_custom_call.1} parent=11 // pred_check_branch
          %150 = sbr.rel (%p148) target = $region16
        $region15: #{tpu_custom_call.1} parent=11 // pred_region
          %152 = vsyncadd [#allocation6], 0
          %s153 = sshll.u32 %s1, 4
          %s154 = int_to_ptr.hbm [resolvable:$true] %s153
          %s155 = sshll.u32 [#allocation5], 4
          %s156 = int_to_ptr.vmem [resolvable:$true] %s155
          %161 = dma.hbm_to_vmem [thread:$0]  %s154, 16384, %s156, [#allocation6], 1024, 1024, 64
        $region16: #{tpu_custom_call.1} parent=11 // pred_fallthru
          _
        // Predicated region
        $region17: #{tpu_custom_call.1} parent=11 // pred_check
          %p162 = pneg %p86
        $region18: #{tpu_custom_call.1} parent=11 // pred_check_branch
          %164 = sbr.rel (%p162) target = $region20
        $region19: #{tpu_custom_call.1} parent=11 // pred_region
          %166 = vsyncadd [#allocation6], 0
          %s168 = sshll.u32 %s2, 4
          %s169 = int_to_ptr.hbm [resolvable:$true] %s168
          %s170 = sshll.u32 [#allocation7], 4
          %s171 = int_to_ptr.vmem [resolvable:$true] %s170
          %173 = dma.hbm_to_vmem [thread:$0]  %s169, 256, %s171, [#allocation6]
        $region20: #{tpu_custom_call.1} parent=11 // pred_fallthru
          _
        // Predicated region
        $region21: #{tpu_custom_call.1} parent=11 // pred_check
          %p174 = pneg %p107
        $region22: #{tpu_custom_call.1} parent=11 // pred_check_branch
          %176 = sbr.rel (%p174) target = $region24
        $region23: #{tpu_custom_call.1} parent=11 // pred_region
          %178 = vsyncadd [#allocation9], 0
          %s180 = sshll.u32 %s3, 4
          %s181 = int_to_ptr.hbm [resolvable:$true] %s180
          %s182 = sshll.u32 [#allocation8], 4
          %s183 = int_to_ptr.vmem [resolvable:$true] %s182
          %185 = dma.hbm_to_vmem [thread:$0]  %s181, 256, %s183, [#allocation9]
        $region24: #{tpu_custom_call.1} parent=11 // pred_fallthru
          _
      $region12: #{tpu_custom_call.1} parent=5 // pred_fallthru
        _
      %p186 = scmp.lt.s32.totalorder %s18, 2
      // Predicated region
      $region25: #{tpu_custom_call.1} parent=5 // pred_check
        %p187 = pneg %p186
      $region26: #{tpu_custom_call.1} parent=5 // pred_check_branch
        %189 = sbr.rel (%p187) target = $region28
      $region27: #{tpu_custom_call.1} parent=5 // pred_region
        // Predicated region
        $region29: #{tpu_custom_call.1} parent=27 // pred_check
          %p190 = pneg %p38
        $region30: #{tpu_custom_call.1} parent=27 // pred_check_branch
          %192 = sbr.rel (%p190) target = $region32
        $region31: #{tpu_custom_call.1} parent=27 // pred_region
          %s193 = sand.u32 %s28, 1
          %s194 = scalar_lea.sflag [#allocation3], %s193
          %s195 = sand.u32 %s28, 1
          %s196 = smul.addr %s195, 8
          %s197 = scalar_lea.vmem [#allocation2], %s196
          %199 = vsyncadd %s194, 0
          %s200 = smul.addr %s18, 8
          %s201 = scalar_lea.hbm %s0, %s200
          %s203 = sshll.u32 %s201, 4
          %s204 = int_to_ptr.hbm [resolvable:$true] %s203
          %s205 = sshll.u32 %s197, 4
          %s206 = int_to_ptr.vmem [resolvable:$true] %s205
          %208 = dma.hbm_to_vmem [thread:$0]  %s204, 128, %s206, %s194
        $region32: #{tpu_custom_call.1} parent=27 // pred_fallthru
          _
      $region28: #{tpu_custom_call.1} parent=5 // pred_fallthru
        _
      %p209 = scmp.le.s32.totalorder 1, %s18
      %p210 = scmp.lt.s32.totalorder %s18, 3
      %p211 = pnand %p209, %p210
      %p212 = pneg %p211
      // Predicated region
      $region33: #{tpu_custom_call.1} parent=5 // pred_check
        _
      $region34: #{tpu_custom_call.1} parent=5 // pred_check_branch
        %214 = sbr.rel (%p211) target = $region36
      $region35: #{tpu_custom_call.1} parent=5 // pred_region
        %s215 = ssub.s32 %s18, 1
        %s216 = sand.u32 %s31, 1
        %s217 = scalar_lea.sflag [#allocation3], %s216
        %s218 = sand.u32 %s31, 1
        %s219 = smul.addr %s218, 8
        %s220 = scalar_lea.vmem [#allocation2], %s219
        // Predicated region
        $region37: #{tpu_custom_call.1} parent=35 // pred_check
          %p221 = pneg %p44
        $region38: #{tpu_custom_call.1} parent=35 // pred_check_branch
          %223 = sbr.rel (%p221) target = $region40
        $region39: #{tpu_custom_call.1} parent=35 // pred_region
          %225 = dma.done %s217, 128
        $region40: #{tpu_custom_call.1} parent=35 // pred_fallthru
          _
        // Predicated region
        $region41: #{tpu_custom_call.1} parent=35 // pred_check
          %p226 = pneg %p65
        $region42: #{tpu_custom_call.1} parent=35 // pred_check_branch
          %228 = sbr.rel (%p226) target = $region44
        $region43: #{tpu_custom_call.1} parent=35 // pred_region
          %230 = dma.done [#allocation6], 16384
        $region44: #{tpu_custom_call.1} parent=35 // pred_fallthru
          _
        // Predicated region
        $region45: #{tpu_custom_call.1} parent=35 // pred_check
          %p231 = pneg %p86
        $region46: #{tpu_custom_call.1} parent=35 // pred_check_branch
          %233 = sbr.rel (%p231) target = $region48
        $region47: #{tpu_custom_call.1} parent=35 // pred_region
          %235 = dma.done [#allocation6], 256
        $region48: #{tpu_custom_call.1} parent=35 // pred_fallthru
          _
        // Predicated region
        $region49: #{tpu_custom_call.1} parent=35 // pred_check
          %p236 = pneg %p107
        $region50: #{tpu_custom_call.1} parent=35 // pred_check_branch
          %238 = sbr.rel (%p236) target = $region52
        $region51: #{tpu_custom_call.1} parent=35 // pred_region
          %240 = dma.done [#allocation9], 256
        $region52: #{tpu_custom_call.1} parent=35 // pred_fallthru
          _
        %s241 = sand.u32 %s31, 1
        %s242 = scalar_lea.sflag [#allocation3], %s241
        %s243 = sand.u32 %s31, 1
        %s244 = smul.addr %s243, 8
        %s245 = scalar_lea.vmem [#allocation2], %s244
        %p246 = pneg %p44
        %p247 = pneg %p41
        %p248 = pneg %p65
        %p249 = pneg %p62
        %p250 = pneg %p86
        %p251 = pneg %p83
        %p252 = pneg %p107
        %p253 = pneg %p104
        %p254 = pneg %p133
        %p255 = pneg %p130
        %s256 = sand.u32 %s120, 1
        %s257 = scalar_lea.sflag [#allocation4], %s256
        %s258 = sand.u32 %s120, 1
        %s259 = smul.addr %s258, 128
        %s260 = scalar_lea.vmem [#allocation10], %s259
        %v261 = vld [vmem:[%s220] sm:$0xff]
        %v262 = vld [vmem:[#allocation5] sm:$0xff]
        %v263 = vld [vmem:[#allocation5 + $0x8] sm:$0xff]
        %v264 = vld [vmem:[#allocation5 + $0x10] sm:$0xff]
        %v265 = vld [vmem:[#allocation5 + $0x18] sm:$0xff]
        %v266 = vld [vmem:[#allocation5 + $0x20] sm:$0xff]
        %v267 = vld [vmem:[#allocation5 + $0x28] sm:$0xff]
        %v268 = vld [vmem:[#allocation5 + $0x30] sm:$0xff]
        %v269 = vld [vmem:[#allocation5 + $0x38] sm:$0xff]
        %v270 = vld [vmem:[#allocation5 + $0x40] sm:$0xff]
        %v271 = vld [vmem:[#allocation5 + $0x48] sm:$0xff]
        %v272 = vld [vmem:[#allocation5 + $0x50] sm:$0xff]
        %v273 = vld [vmem:[#allocation5 + $0x58] sm:$0xff]
        %v274 = vld [vmem:[#allocation5 + $0x60] sm:$0xff]
        %v275 = vld [vmem:[#allocation5 + $0x68] sm:$0xff]
        %v276 = vld [vmem:[#allocation5 + $0x70] sm:$0xff]
        %v277 = vld [vmem:[#allocation5 + $0x78] sm:$0xff]
        %v278 = vld [vmem:[#allocation5 + $0x80] sm:$0xff]
        %v279 = vld [vmem:[#allocation5 + $0x88] sm:$0xff]
        %v280 = vld [vmem:[#allocation5 + $0x90] sm:$0xff]
        %v281 = vld [vmem:[#allocation5 + $0x98] sm:$0xff]
        %v282 = vld [vmem:[#allocation5 + $0xa0] sm:$0xff]
        %v283 = vld [vmem:[#allocation5 + $0xa8] sm:$0xff]
        %v284 = vld [vmem:[#allocation5 + $0xb0] sm:$0xff]
        %v285 = vld [vmem:[#allocation5 + $0xb8] sm:$0xff]
        %v286 = vld [vmem:[#allocation5 + $0xc0] sm:$0xff]
        %v287 = vld [vmem:[#allocation5 + $0xc8] sm:$0xff]
        %v288 = vld [vmem:[#allocation5 + $0xd0] sm:$0xff]
        %v289 = vld [vmem:[#allocation5 + $0xd8] sm:$0xff]
        %v290 = vld [vmem:[#allocation5 + $0xe0] sm:$0xff]
        %v291 = vld [vmem:[#allocation5 + $0xe8] sm:$0xff]
        %v292 = vld [vmem:[#allocation5 + $0xf0] sm:$0xff]
        %v293 = vld [vmem:[#allocation5 + $0xf8] sm:$0xff]
        %v294 = vld [vmem:[#allocation5 + $0x100] sm:$0xff]
        %v295 = vld [vmem:[#allocation5 + $0x108] sm:$0xff]
        %v296 = vld [vmem:[#allocation5 + $0x110] sm:$0xff]
        %v297 = vld [vmem:[#allocation5 + $0x118] sm:$0xff]
        %v298 = vld [vmem:[#allocation5 + $0x120] sm:$0xff]
        %v299 = vld [vmem:[#allocation5 + $0x128] sm:$0xff]
        %v300 = vld [vmem:[#allocation5 + $0x130] sm:$0xff]
        %v301 = vld [vmem:[#allocation5 + $0x138] sm:$0xff]
        %v302 = vld [vmem:[#allocation5 + $0x140] sm:$0xff]
        %v303 = vld [vmem:[#allocation5 + $0x148] sm:$0xff]
        %v304 = vld [vmem:[#allocation5 + $0x150] sm:$0xff]
        %v305 = vld [vmem:[#allocation5 + $0x158] sm:$0xff]
        %v306 = vld [vmem:[#allocation5 + $0x160] sm:$0xff]
        %v307 = vld [vmem:[#allocation5 + $0x168] sm:$0xff]
        %v308 = vld [vmem:[#allocation5 + $0x170] sm:$0xff]
        %v309 = vld [vmem:[#allocation5 + $0x178] sm:$0xff]
        %v310 = vld [vmem:[#allocation5 + $0x180] sm:$0xff]
        %v311 = vld [vmem:[#allocation5 + $0x188] sm:$0xff]
        %v312 = vld [vmem:[#allocation5 + $0x190] sm:$0xff]
        %v313 = vld [vmem:[#allocation5 + $0x198] sm:$0xff]
        %v314 = vld [vmem:[#allocation5 + $0x1a0] sm:$0xff]
        %v315 = vld [vmem:[#allocation5 + $0x1a8] sm:$0xff]
        %v316 = vld [vmem:[#allocation5 + $0x1b0] sm:$0xff]
        %v317 = vld [vmem:[#allocation5 + $0x1b8] sm:$0xff]
        %v318 = vld [vmem:[#allocation5 + $0x1c0] sm:$0xff]
        %v319 = vld [vmem:[#allocation5 + $0x1c8] sm:$0xff]
        %v320 = vld [vmem:[#allocation5 + $0x1d0] sm:$0xff]
        %v321 = vld [vmem:[#allocation5 + $0x1d8] sm:$0xff]
        %v322 = vld [vmem:[#allocation5 + $0x1e0] sm:$0xff]
        %v323 = vld [vmem:[#allocation5 + $0x1e8] sm:$0xff]
        %v324 = vld [vmem:[#allocation5 + $0x1f0] sm:$0xff]
        %v325 = vld [vmem:[#allocation5 + $0x1f8] sm:$0xff]
        %v326 = vld [vmem:[#allocation5 + $0x200] sm:$0xff]
        %v327 = vld [vmem:[#allocation5 + $0x208] sm:$0xff]
        %v328 = vld [vmem:[#allocation5 + $0x210] sm:$0xff]
        %v329 = vld [vmem:[#allocation5 + $0x218] sm:$0xff]
        %v330 = vld [vmem:[#allocation5 + $0x220] sm:$0xff]
        %v331 = vld [vmem:[#allocation5 + $0x228] sm:$0xff]
        %v332 = vld [vmem:[#allocation5 + $0x230] sm:$0xff]
        %v333 = vld [vmem:[#allocation5 + $0x238] sm:$0xff]
        %v334 = vld [vmem:[#allocation5 + $0x240] sm:$0xff]
        %v335 = vld [vmem:[#allocation5 + $0x248] sm:$0xff]
        %v336 = vld [vmem:[#allocation5 + $0x250] sm:$0xff]
        %v337 = vld [vmem:[#allocation5 + $0x258] sm:$0xff]
        %v338 = vld [vmem:[#allocation5 + $0x260] sm:$0xff]
        %v339 = vld [vmem:[#allocation5 + $0x268] sm:$0xff]
        %v340 = vld [vmem:[#allocation5 + $0x270] sm:$0xff]
        %v341 = vld [vmem:[#allocation5 + $0x278] sm:$0xff]
        %v342 = vld [vmem:[#allocation5 + $0x280] sm:$0xff]
        %v343 = vld [vmem:[#allocation5 + $0x288] sm:$0xff]
        %v344 = vld [vmem:[#allocation5 + $0x290] sm:$0xff]
        %v345 = vld [vmem:[#allocation5 + $0x298] sm:$0xff]
        %v346 = vld [vmem:[#allocation5 + $0x2a0] sm:$0xff]
        %v347 = vld [vmem:[#allocation5 + $0x2a8] sm:$0xff]
        %v348 = vld [vmem:[#allocation5 + $0x2b0] sm:$0xff]
        %v349 = vld [vmem:[#allocation5 + $0x2b8] sm:$0xff]
        %v350 = vld [vmem:[#allocation5 + $0x2c0] sm:$0xff]
        %v351 = vld [vmem:[#allocation5 + $0x2c8] sm:$0xff]
        %v352 = vld [vmem:[#allocation5 + $0x2d0] sm:$0xff]
        %v353 = vld [vmem:[#allocation5 + $0x2d8] sm:$0xff]
        %v354 = vld [vmem:[#allocation5 + $0x2e0] sm:$0xff]
        %v355 = vld [vmem:[#allocation5 + $0x2e8] sm:$0xff]
        %v356 = vld [vmem:[#allocation5 + $0x2f0] sm:$0xff]
        %v357 = vld [vmem:[#allocation5 + $0x2f8] sm:$0xff]
        %v358 = vld [vmem:[#allocation5 + $0x300] sm:$0xff]
        %v359 = vld [vmem:[#allocation5 + $0x308] sm:$0xff]
        %v360 = vld [vmem:[#allocation5 + $0x310] sm:$0xff]
        %v361 = vld [vmem:[#allocation5 + $0x318] sm:$0xff]
        %v362 = vld [vmem:[#allocation5 + $0x320] sm:$0xff]
        %v363 = vld [vmem:[#allocation5 + $0x328] sm:$0xff]
        %v364 = vld [vmem:[#allocation5 + $0x330] sm:$0xff]
        %v365 = vld [vmem:[#allocation5 + $0x338] sm:$0xff]
        %v366 = vld [vmem:[#allocation5 + $0x340] sm:$0xff]
        %v367 = vld [vmem:[#allocation5 + $0x348] sm:$0xff]
        %v368 = vld [vmem:[#allocation5 + $0x350] sm:$0xff]
        %v369 = vld [vmem:[#allocation5 + $0x358] sm:$0xff]
        %v370 = vld [vmem:[#allocation5 + $0x360] sm:$0xff]
        %v371 = vld [vmem:[#allocation5 + $0x368] sm:$0xff]
        %v372 = vld [vmem:[#allocation5 + $0x370] sm:$0xff]
        %v373 = vld [vmem:[#allocation5 + $0x378] sm:$0xff]
        %v374 = vld [vmem:[#allocation5 + $0x380] sm:$0xff]
        %v375 = vld [vmem:[#allocation5 + $0x388] sm:$0xff]
        %v376 = vld [vmem:[#allocation5 + $0x390] sm:$0xff]
        %v377 = vld [vmem:[#allocation5 + $0x398] sm:$0xff]
        %v378 = vld [vmem:[#allocation5 + $0x3a0] sm:$0xff]
        %v379 = vld [vmem:[#allocation5 + $0x3a8] sm:$0xff]
        %v380 = vld [vmem:[#allocation5 + $0x3b0] sm:$0xff]
        %v381 = vld [vmem:[#allocation5 + $0x3b8] sm:$0xff]
        %v382 = vld [vmem:[#allocation5 + $0x3c0] sm:$0xff]
        %v383 = vld [vmem:[#allocation5 + $0x3c8] sm:$0xff]
        %v384 = vld [vmem:[#allocation5 + $0x3d0] sm:$0xff]
        %v385 = vld [vmem:[#allocation5 + $0x3d8] sm:$0xff]
        %v386 = vld [vmem:[#allocation5 + $0x3e0] sm:$0xff]
        %v387 = vld [vmem:[#allocation5 + $0x3e8] sm:$0xff]
        %v388 = vld [vmem:[#allocation5 + $0x3f0] sm:$0xff]
        %v389 = vld [vmem:[#allocation5 + $0x3f8] sm:$0xff]
        %v390 = vpack.c.bf16 %v261, %v261
        %v391 = vunpack.c.l.bf16 %v390
        %v392 = vsub.f32 %v261, %v391
        %v393 = vpack.c.bf16 %v392, %v392
        %v522 = vunpack.c.l.b16 %v262
        %v523 = vunpack.c.h.b16 %v262
        %v524 = vunpack.c.l.b16 %v263
        %v525 = vunpack.c.h.b16 %v263
        %v526 = vunpack.c.l.b16 %v264
        %v527 = vunpack.c.h.b16 %v264
        %v528 = vunpack.c.l.b16 %v265
        %v529 = vunpack.c.h.b16 %v265
        %v530 = vunpack.c.l.b16 %v266
        %v531 = vunpack.c.h.b16 %v266
        %v532 = vunpack.c.l.b16 %v267
        %v533 = vunpack.c.h.b16 %v267
        %v534 = vunpack.c.l.b16 %v268
        %v535 = vunpack.c.h.b16 %v268
        %v536 = vunpack.c.l.b16 %v269
        %v537 = vunpack.c.h.b16 %v269
        %v538 = vunpack.c.l.b16 %v270
        %v539 = vunpack.c.h.b16 %v270
        %v540 = vunpack.c.l.b16 %v271
        %v541 = vunpack.c.h.b16 %v271
        %v542 = vunpack.c.l.b16 %v272
        %v543 = vunpack.c.h.b16 %v272
        %v544 = vunpack.c.l.b16 %v273
        %v545 = vunpack.c.h.b16 %v273
        %v546 = vunpack.c.l.b16 %v274
        %v547 = vunpack.c.h.b16 %v274
        %v548 = vunpack.c.l.b16 %v275
        %v549 = vunpack.c.h.b16 %v275
        %v550 = vunpack.c.l.b16 %v276
        %v551 = vunpack.c.h.b16 %v276
        %v552 = vunpack.c.l.b16 %v277
        %v553 = vunpack.c.h.b16 %v277
        %v554 = vunpack.c.l.b16 %v278
        %v555 = vunpack.c.h.b16 %v278
        %v556 = vunpack.c.l.b16 %v279
        %v557 = vunpack.c.h.b16 %v279
        %v558 = vunpack.c.l.b16 %v280
        %v559 = vunpack.c.h.b16 %v280
        %v560 = vunpack.c.l.b16 %v281
        %v561 = vunpack.c.h.b16 %v281
        %v562 = vunpack.c.l.b16 %v282
        %v563 = vunpack.c.h.b16 %v282
        %v564 = vunpack.c.l.b16 %v283
        %v565 = vunpack.c.h.b16 %v283
        %v566 = vunpack.c.l.b16 %v284
        %v567 = vunpack.c.h.b16 %v284
        %v568 = vunpack.c.l.b16 %v285
        %v569 = vunpack.c.h.b16 %v285
        %v570 = vunpack.c.l.b16 %v286
        %v571 = vunpack.c.h.b16 %v286
        %v572 = vunpack.c.l.b16 %v287
        %v573 = vunpack.c.h.b16 %v287
        %v574 = vunpack.c.l.b16 %v288
        %v575 = vunpack.c.h.b16 %v288
        %v576 = vunpack.c.l.b16 %v289
        %v577 = vunpack.c.h.b16 %v289
        %v578 = vunpack.c.l.b16 %v290
        %v579 = vunpack.c.h.b16 %v290
        %v580 = vunpack.c.l.b16 %v291
        %v581 = vunpack.c.h.b16 %v291
        %v582 = vunpack.c.l.b16 %v292
        %v583 = vunpack.c.h.b16 %v292
        %v584 = vunpack.c.l.b16 %v293
        %v585 = vunpack.c.h.b16 %v293
        %v586 = vunpack.c.l.b16 %v294
        %v587 = vunpack.c.h.b16 %v294
        %v588 = vunpack.c.l.b16 %v295
        %v589 = vunpack.c.h.b16 %v295
        %v590 = vunpack.c.l.b16 %v296
        %v591 = vunpack.c.h.b16 %v296
        %v592 = vunpack.c.l.b16 %v297
        %v593 = vunpack.c.h.b16 %v297
        %v594 = vunpack.c.l.b16 %v298
        %v595 = vunpack.c.h.b16 %v298
        %v596 = vunpack.c.l.b16 %v299
        %v597 = vunpack.c.h.b16 %v299
        %v598 = vunpack.c.l.b16 %v300
        %v599 = vunpack.c.h.b16 %v300
        %v600 = vunpack.c.l.b16 %v301
        %v601 = vunpack.c.h.b16 %v301
        %v602 = vunpack.c.l.b16 %v302
        %v603 = vunpack.c.h.b16 %v302
        %v604 = vunpack.c.l.b16 %v303
        %v605 = vunpack.c.h.b16 %v303
        %v606 = vunpack.c.l.b16 %v304
        %v607 = vunpack.c.h.b16 %v304
        %v608 = vunpack.c.l.b16 %v305
        %v609 = vunpack.c.h.b16 %v305
        %v610 = vunpack.c.l.b16 %v306
        %v611 = vunpack.c.h.b16 %v306
        %v612 = vunpack.c.l.b16 %v307
        %v613 = vunpack.c.h.b16 %v307
        %v614 = vunpack.c.l.b16 %v308
        %v615 = vunpack.c.h.b16 %v308
        %v616 = vunpack.c.l.b16 %v309
        %v617 = vunpack.c.h.b16 %v309
        %v618 = vunpack.c.l.b16 %v310
        %v619 = vunpack.c.h.b16 %v310
        %v620 = vunpack.c.l.b16 %v311
        %v621 = vunpack.c.h.b16 %v311
        %v622 = vunpack.c.l.b16 %v312
        %v623 = vunpack.c.h.b16 %v312
        %v624 = vunpack.c.l.b16 %v313
        %v625 = vunpack.c.h.b16 %v313
        %v626 = vunpack.c.l.b16 %v314
        %v627 = vunpack.c.h.b16 %v314
        %v628 = vunpack.c.l.b16 %v315
        %v629 = vunpack.c.h.b16 %v315
        %v630 = vunpack.c.l.b16 %v316
        %v631 = vunpack.c.h.b16 %v316
        %v632 = vunpack.c.l.b16 %v317
        %v633 = vunpack.c.h.b16 %v317
        %v634 = vunpack.c.l.b16 %v318
        %v635 = vunpack.c.h.b16 %v318
        %v636 = vunpack.c.l.b16 %v319
        %v637 = vunpack.c.h.b16 %v319
        %v638 = vunpack.c.l.b16 %v320
        %v639 = vunpack.c.h.b16 %v320
        %v640 = vunpack.c.l.b16 %v321
        %v641 = vunpack.c.h.b16 %v321
        %v642 = vunpack.c.l.b16 %v322
        %v643 = vunpack.c.h.b16 %v322
        %v644 = vunpack.c.l.b16 %v323
        %v645 = vunpack.c.h.b16 %v323
        %v646 = vunpack.c.l.b16 %v324
        %v647 = vunpack.c.h.b16 %v324
        %v648 = vunpack.c.l.b16 %v325
        %v649 = vunpack.c.h.b16 %v325
        %v650 = vunpack.c.l.b16 %v326
        %v651 = vunpack.c.h.b16 %v326
        %v652 = vunpack.c.l.b16 %v327
        %v653 = vunpack.c.h.b16 %v327
        %v654 = vunpack.c.l.b16 %v328
        %v655 = vunpack.c.h.b16 %v328
        %v656 = vunpack.c.l.b16 %v329
        %v657 = vunpack.c.h.b16 %v329
        %v658 = vunpack.c.l.b16 %v330
        %v659 = vunpack.c.h.b16 %v330
        %v660 = vunpack.c.l.b16 %v331
        %v661 = vunpack.c.h.b16 %v331
        %v662 = vunpack.c.l.b16 %v332
        %v663 = vunpack.c.h.b16 %v332
        %v664 = vunpack.c.l.b16 %v333
        %v665 = vunpack.c.h.b16 %v333
        %v666 = vunpack.c.l.b16 %v334
        %v667 = vunpack.c.h.b16 %v334
        %v668 = vunpack.c.l.b16 %v335
        %v669 = vunpack.c.h.b16 %v335
        %v670 = vunpack.c.l.b16 %v336
        %v671 = vunpack.c.h.b16 %v336
        %v672 = vunpack.c.l.b16 %v337
        %v673 = vunpack.c.h.b16 %v337
        %v674 = vunpack.c.l.b16 %v338
        %v675 = vunpack.c.h.b16 %v338
        %v676 = vunpack.c.l.b16 %v339
        %v677 = vunpack.c.h.b16 %v339
        %v678 = vunpack.c.l.b16 %v340
        %v679 = vunpack.c.h.b16 %v340
        %v680 = vunpack.c.l.b16 %v341
        %v681 = vunpack.c.h.b16 %v341
        %v682 = vunpack.c.l.b16 %v342
        %v683 = vunpack.c.h.b16 %v342
        %v684 = vunpack.c.l.b16 %v343
        %v685 = vunpack.c.h.b16 %v343
        %v686 = vunpack.c.l.b16 %v344
        %v687 = vunpack.c.h.b16 %v344
        %v688 = vunpack.c.l.b16 %v345
        %v689 = vunpack.c.h.b16 %v345
        %v690 = vunpack.c.l.b16 %v346
        %v691 = vunpack.c.h.b16 %v346
        %v692 = vunpack.c.l.b16 %v347
        %v693 = vunpack.c.h.b16 %v347
        %v694 = vunpack.c.l.b16 %v348
        %v695 = vunpack.c.h.b16 %v348
        %v696 = vunpack.c.l.b16 %v349
        %v697 = vunpack.c.h.b16 %v349
        %v698 = vunpack.c.l.b16 %v350
        %v699 = vunpack.c.h.b16 %v350
        %v700 = vunpack.c.l.b16 %v351
        %v701 = vunpack.c.h.b16 %v351
        %v702 = vunpack.c.l.b16 %v352
        %v703 = vunpack.c.h.b16 %v352
        %v704 = vunpack.c.l.b16 %v353
        %v705 = vunpack.c.h.b16 %v353
        %v706 = vunpack.c.l.b16 %v354
        %v707 = vunpack.c.h.b16 %v354
        %v708 = vunpack.c.l.b16 %v355
        %v709 = vunpack.c.h.b16 %v355
        %v710 = vunpack.c.l.b16 %v356
        %v711 = vunpack.c.h.b16 %v356
        %v712 = vunpack.c.l.b16 %v357
        %v713 = vunpack.c.h.b16 %v357
        %v714 = vunpack.c.l.b16 %v358
        %v715 = vunpack.c.h.b16 %v358
        %v716 = vunpack.c.l.b16 %v359
        %v717 = vunpack.c.h.b16 %v359
        %v718 = vunpack.c.l.b16 %v360
        %v719 = vunpack.c.h.b16 %v360
        %v720 = vunpack.c.l.b16 %v361
        %v721 = vunpack.c.h.b16 %v361
        %v722 = vunpack.c.l.b16 %v362
        %v723 = vunpack.c.h.b16 %v362
        %v724 = vunpack.c.l.b16 %v363
        %v725 = vunpack.c.h.b16 %v363
        %v726 = vunpack.c.l.b16 %v364
        %v727 = vunpack.c.h.b16 %v364
        %v728 = vunpack.c.l.b16 %v365
        %v729 = vunpack.c.h.b16 %v365
        %v730 = vunpack.c.l.b16 %v366
        %v731 = vunpack.c.h.b16 %v366
        %v732 = vunpack.c.l.b16 %v367
        %v733 = vunpack.c.h.b16 %v367
        %v734 = vunpack.c.l.b16 %v368
        %v735 = vunpack.c.h.b16 %v368
        %v736 = vunpack.c.l.b16 %v369
        %v737 = vunpack.c.h.b16 %v369
        %v738 = vunpack.c.l.b16 %v370
        %v739 = vunpack.c.h.b16 %v370
        %v740 = vunpack.c.l.b16 %v371
        %v741 = vunpack.c.h.b16 %v371
        %v742 = vunpack.c.l.b16 %v372
        %v743 = vunpack.c.h.b16 %v372
        %v744 = vunpack.c.l.b16 %v373
        %v745 = vunpack.c.h.b16 %v373
        %v746 = vunpack.c.l.b16 %v374
        %v747 = vunpack.c.h.b16 %v374
        %v748 = vunpack.c.l.b16 %v375
        %v749 = vunpack.c.h.b16 %v375
        %v750 = vunpack.c.l.b16 %v376
        %v751 = vunpack.c.h.b16 %v376
        %v752 = vunpack.c.l.b16 %v377
        %v753 = vunpack.c.h.b16 %v377
        %v754 = vunpack.c.l.b16 %v378
        %v755 = vunpack.c.h.b16 %v378
        %v756 = vunpack.c.l.b16 %v379
        %v757 = vunpack.c.h.b16 %v379
        %v758 = vunpack.c.l.b16 %v380
        %v759 = vunpack.c.h.b16 %v380
        %v760 = vunpack.c.l.b16 %v381
        %v761 = vunpack.c.h.b16 %v381
        %v762 = vunpack.c.l.b16 %v382
        %v763 = vunpack.c.h.b16 %v382
        %v764 = vunpack.c.l.b16 %v383
        %v765 = vunpack.c.h.b16 %v383
        %v766 = vunpack.c.l.b16 %v384
        %v767 = vunpack.c.h.b16 %v384
        %v768 = vunpack.c.l.b16 %v385
        %v769 = vunpack.c.h.b16 %v385
        %v770 = vunpack.c.l.b16 %v386
        %v771 = vunpack.c.h.b16 %v386
        %v772 = vunpack.c.l.b16 %v387
        %v773 = vunpack.c.h.b16 %v387
        %v774 = vunpack.c.l.b16 %v388
        %v775 = vunpack.c.h.b16 %v388
        %v776 = vunpack.c.l.b16 %v389
        %v777 = vunpack.c.h.b16 %v389
        %v778 = vpack.c.b16 %v538, %v522
        %v779 = vpack.c.b16 %v539, %v523
        %v780 = vpack.c.b16 %v540, %v524
        %v781 = vpack.c.b16 %v541, %v525
        %v782 = vpack.c.b16 %v542, %v526
        %v783 = vpack.c.b16 %v543, %v527
        %v784 = vpack.c.b16 %v544, %v528
        %v785 = vpack.c.b16 %v545, %v529
        %v786 = vpack.c.b16 %v546, %v530
        %v787 = vpack.c.b16 %v547, %v531
        %v788 = vpack.c.b16 %v548, %v532
        %v789 = vpack.c.b16 %v549, %v533
        %v790 = vpack.c.b16 %v550, %v534
        %v791 = vpack.c.b16 %v551, %v535
        %v792 = vpack.c.b16 %v552, %v536
        %v793 = vpack.c.b16 %v553, %v537
        %v794 = vpack.c.b16 %v570, %v554
        %v795 = vpack.c.b16 %v571, %v555
        %v796 = vpack.c.b16 %v572, %v556
        %v797 = vpack.c.b16 %v573, %v557
        %v798 = vpack.c.b16 %v574, %v558
        %v799 = vpack.c.b16 %v575, %v559
        %v800 = vpack.c.b16 %v576, %v560
        %v801 = vpack.c.b16 %v577, %v561
        %v802 = vpack.c.b16 %v578, %v562
        %v803 = vpack.c.b16 %v579, %v563
        %v804 = vpack.c.b16 %v580, %v564
        %v805 = vpack.c.b16 %v581, %v565
        %v806 = vpack.c.b16 %v582, %v566
        %v807 = vpack.c.b16 %v583, %v567
        %v808 = vpack.c.b16 %v584, %v568
        %v809 = vpack.c.b16 %v585, %v569
        %v810 = vpack.c.b16 %v602, %v586
        %v811 = vpack.c.b16 %v603, %v587
        %v812 = vpack.c.b16 %v604, %v588
        %v813 = vpack.c.b16 %v605, %v589
        %v814 = vpack.c.b16 %v606, %v590
        %v815 = vpack.c.b16 %v607, %v591
        %v816 = vpack.c.b16 %v608, %v592
        %v817 = vpack.c.b16 %v609, %v593
        %v818 = vpack.c.b16 %v610, %v594
        %v819 = vpack.c.b16 %v611, %v595
        %v820 = vpack.c.b16 %v612, %v596
        %v821 = vpack.c.b16 %v613, %v597
        %v822 = vpack.c.b16 %v614, %v598
        %v823 = vpack.c.b16 %v615, %v599
        %v824 = vpack.c.b16 %v616, %v600
        %v825 = vpack.c.b16 %v617, %v601
        %v826 = vpack.c.b16 %v634, %v618
        %v827 = vpack.c.b16 %v635, %v619
        %v828 = vpack.c.b16 %v636, %v620
        %v829 = vpack.c.b16 %v637, %v621
        %v830 = vpack.c.b16 %v638, %v622
        %v831 = vpack.c.b16 %v639, %v623
        %v832 = vpack.c.b16 %v640, %v624
        %v833 = vpack.c.b16 %v641, %v625
        %v834 = vpack.c.b16 %v642, %v626
        %v835 = vpack.c.b16 %v643, %v627
        %v836 = vpack.c.b16 %v644, %v628
        %v837 = vpack.c.b16 %v645, %v629
        %v838 = vpack.c.b16 %v646, %v630
        %v839 = vpack.c.b16 %v647, %v631
        %v840 = vpack.c.b16 %v648, %v632
        %v841 = vpack.c.b16 %v649, %v633
        %v842 = vpack.c.b16 %v666, %v650
        %v843 = vpack.c.b16 %v667, %v651
        %v844 = vpack.c.b16 %v668, %v652
        %v845 = vpack.c.b16 %v669, %v653
        %v846 = vpack.c.b16 %v670, %v654
        %v847 = vpack.c.b16 %v671, %v655
        %v848 = vpack.c.b16 %v672, %v656
        %v849 = vpack.c.b16 %v673, %v657
        %v850 = vpack.c.b16 %v674, %v658
        %v851 = vpack.c.b16 %v675, %v659
        %v852 = vpack.c.b16 %v676, %v660
        %v853 = vpack.c.b16 %v677, %v661
        %v854 = vpack.c.b16 %v678, %v662
        %v855 = vpack.c.b16 %v679, %v663
        %v856 = vpack.c.b16 %v680, %v664
        %v857 = vpack.c.b16 %v681, %v665
        %v858 = vpack.c.b16 %v698, %v682
        %v859 = vpack.c.b16 %v699, %v683
        %v860 = vpack.c.b16 %v700, %v684
        %v861 = vpack.c.b16 %v701, %v685
        %v862 = vpack.c.b16 %v702, %v686
        %v863 = vpack.c.b16 %v703, %v687
        %v864 = vpack.c.b16 %v704, %v688
        %v865 = vpack.c.b16 %v705, %v689
        %v866 = vpack.c.b16 %v706, %v690
        %v867 = vpack.c.b16 %v707, %v691
        %v868 = vpack.c.b16 %v708, %v692
        %v869 = vpack.c.b16 %v709, %v693
        %v870 = vpack.c.b16 %v710, %v694
        %v871 = vpack.c.b16 %v711, %v695
        %v872 = vpack.c.b16 %v712, %v696
        %v873 = vpack.c.b16 %v713, %v697
        %v874 = vpack.c.b16 %v730, %v714
        %v875 = vpack.c.b16 %v731, %v715
        %v876 = vpack.c.b16 %v732, %v716
        %v877 = vpack.c.b16 %v733, %v717
        %v878 = vpack.c.b16 %v734, %v718
        %v879 = vpack.c.b16 %v735, %v719
        %v880 = vpack.c.b16 %v736, %v720
        %v881 = vpack.c.b16 %v737, %v721
        %v882 = vpack.c.b16 %v738, %v722
        %v883 = vpack.c.b16 %v739, %v723
        %v884 = vpack.c.b16 %v740, %v724
        %v885 = vpack.c.b16 %v741, %v725
        %v886 = vpack.c.b16 %v742, %v726
        %v887 = vpack.c.b16 %v743, %v727
        %v888 = vpack.c.b16 %v744, %v728
        %v889 = vpack.c.b16 %v745, %v729
        %v890 = vpack.c.b16 %v762, %v746
        %v891 = vpack.c.b16 %v763, %v747
        %v892 = vpack.c.b16 %v764, %v748
        %v893 = vpack.c.b16 %v765, %v749
        %v894 = vpack.c.b16 %v766, %v750
        %v895 = vpack.c.b16 %v767, %v751
        %v896 = vpack.c.b16 %v768, %v752
        %v897 = vpack.c.b16 %v769, %v753
        %v898 = vpack.c.b16 %v770, %v754
        %v899 = vpack.c.b16 %v771, %v755
        %v900 = vpack.c.b16 %v772, %v756
        %v901 = vpack.c.b16 %v773, %v757
        %v902 = vpack.c.b16 %v774, %v758
        %v903 = vpack.c.b16 %v775, %v759
        %v904 = vpack.c.b16 %v776, %v760
        %v905 = vpack.c.b16 %v777, %v761
        %1034 = vmatpush.bf16.msra.mxu0 %v890
        %1035 = vmatpush.bf16.msra.mxu0 %v874
        %1036 = vmatpush.bf16.msra.mxu0 %v858
        %1037 = vmatpush.bf16.msra.mxu0 %v842
        %1038 = vmatpush.bf16.msra.mxu0 %v826
        %1039 = vmatpush.bf16.msra.mxu0 %v810
        %1040 = vmatpush.bf16.msra.mxu0 %v794
        %1041 = vmatpush.bf16.msra.mxu0 %v778
        %1042 = vmatmul.bf16.gmra.mxu0 %v393
        %v1043 = vpop.f32.mrf.mxu0
        %v1044 = vadd.f32 0.0, %v1043
        %v1045 = vpop.f32.mrf.mxu0
        %1046 = vdwg.mxu0
        %1047 = vmatpush.bf16.msra.mxu0 %v891
        %1048 = vmatpush.bf16.msra.mxu0 %v875
        %1049 = vmatpush.bf16.msra.mxu0 %v859
        %1050 = vmatpush.bf16.msra.mxu0 %v843
        %1051 = vmatpush.bf16.msra.mxu0 %v827
        %1052 = vmatpush.bf16.msra.mxu0 %v811
        %1053 = vmatpush.bf16.msra.mxu0 %v795
        %1054 = vmatpush.bf16.msra.mxu0 %v779
        %1055 = vmatmul.bf16.gmra.mxu0 %v393
        %v1056 = vpop.f32.mrf.mxu0
        %v1057 = vadd.f32 0.0, %v1056
        %v1058 = vpop.f32.mrf.mxu0
        %1059 = vdwg.mxu0
        %1060 = vmatpush.bf16.msra.mxu0 %v892
        %1061 = vmatpush.bf16.msra.mxu0 %v876
        %1062 = vmatpush.bf16.msra.mxu0 %v860
        %1063 = vmatpush.bf16.msra.mxu0 %v844
        %1064 = vmatpush.bf16.msra.mxu0 %v828
        %1065 = vmatpush.bf16.msra.mxu0 %v812
        %1066 = vmatpush.bf16.msra.mxu0 %v796
        %1067 = vmatpush.bf16.msra.mxu0 %v780
        %1068 = vmatmul.bf16.gmra.mxu0 %v393
        %v1069 = vpop.f32.mrf.mxu0
        %v1070 = vadd.f32 0.0, %v1069
        %v1071 = vpop.f32.mrf.mxu0
        %1072 = vdwg.mxu0
        %1073 = vmatpush.bf16.msra.mxu0 %v893
        %1074 = vmatpush.bf16.msra.mxu0 %v877
        %1075 = vmatpush.bf16.msra.mxu0 %v861
        %1076 = vmatpush.bf16.msra.mxu0 %v845
        %1077 = vmatpush.bf16.msra.mxu0 %v829
        %1078 = vmatpush.bf16.msra.mxu0 %v813
        %1079 = vmatpush.bf16.msra.mxu0 %v797
        %1080 = vmatpush.bf16.msra.mxu0 %v781
        %1081 = vmatmul.bf16.gmra.mxu0 %v393
        %v1082 = vpop.f32.mrf.mxu0
        %v1083 = vadd.f32 0.0, %v1082
        %v1084 = vpop.f32.mrf.mxu0
        %1085 = vdwg.mxu0
        %1086 = vmatpush.bf16.msra.mxu0 %v894
        %1087 = vmatpush.bf16.msra.mxu0 %v878
        %1088 = vmatpush.bf16.msra.mxu0 %v862
        %1089 = vmatpush.bf16.msra.mxu0 %v846
        %1090 = vmatpush.bf16.msra.mxu0 %v830
        %1091 = vmatpush.bf16.msra.mxu0 %v814
        %1092 = vmatpush.bf16.msra.mxu0 %v798
        %1093 = vmatpush.bf16.msra.mxu0 %v782
        %1094 = vmatmul.bf16.gmra.mxu0 %v393
        %v1095 = vpop.f32.mrf.mxu0
        %v1096 = vadd.f32 0.0, %v1095
        %v1097 = vpop.f32.mrf.mxu0
        %1098 = vdwg.mxu0
        %1099 = vmatpush.bf16.msra.mxu0 %v895
        %1100 = vmatpush.bf16.msra.mxu0 %v879
        %1101 = vmatpush.bf16.msra.mxu0 %v863
        %1102 = vmatpush.bf16.msra.mxu0 %v847
        %1103 = vmatpush.bf16.msra.mxu0 %v831
        %1104 = vmatpush.bf16.msra.mxu0 %v815
        %1105 = vmatpush.bf16.msra.mxu0 %v799
        %1106 = vmatpush.bf16.msra.mxu0 %v783
        %1107 = vmatmul.bf16.gmra.mxu0 %v393
        %v1108 = vpop.f32.mrf.mxu0
        %v1109 = vadd.f32 0.0, %v1108
        %v1110 = vpop.f32.mrf.mxu0
        %1111 = vdwg.mxu0
        %1112 = vmatpush.bf16.msra.mxu0 %v896
        %1113 = vmatpush.bf16.msra.mxu0 %v880
        %1114 = vmatpush.bf16.msra.mxu0 %v864
        %1115 = vmatpush.bf16.msra.mxu0 %v848
        %1116 = vmatpush.bf16.msra.mxu0 %v832
        %1117 = vmatpush.bf16.msra.mxu0 %v816
        %1118 = vmatpush.bf16.msra.mxu0 %v800
        %1119 = vmatpush.bf16.msra.mxu0 %v784
        %1120 = vmatmul.bf16.gmra.mxu0 %v393
        %v1121 = vpop.f32.mrf.mxu0
        %v1122 = vadd.f32 0.0, %v1121
        %v1123 = vpop.f32.mrf.mxu0
        %1124 = vdwg.mxu0
        %1125 = vmatpush.bf16.msra.mxu0 %v897
        %1126 = vmatpush.bf16.msra.mxu0 %v881
        %1127 = vmatpush.bf16.msra.mxu0 %v865
        %1128 = vmatpush.bf16.msra.mxu0 %v849
        %1129 = vmatpush.bf16.msra.mxu0 %v833
        %1130 = vmatpush.bf16.msra.mxu0 %v817
        %1131 = vmatpush.bf16.msra.mxu0 %v801
        %1132 = vmatpush.bf16.msra.mxu0 %v785
        %1133 = vmatmul.bf16.gmra.mxu0 %v393
        %v1134 = vpop.f32.mrf.mxu0
        %v1135 = vadd.f32 0.0, %v1134
        %v1136 = vpop.f32.mrf.mxu0
        %1137 = vdwg.mxu0
        %1138 = vmatpush.bf16.msra.mxu0 %v898
        %1139 = vmatpush.bf16.msra.mxu0 %v882
        %1140 = vmatpush.bf16.msra.mxu0 %v866
        %1141 = vmatpush.bf16.msra.mxu0 %v850
        %1142 = vmatpush.bf16.msra.mxu0 %v834
        %1143 = vmatpush.bf16.msra.mxu0 %v818
        %1144 = vmatpush.bf16.msra.mxu0 %v802
        %1145 = vmatpush.bf16.msra.mxu0 %v786
        %1146 = vmatmul.bf16.gmra.mxu0 %v393
        %v1147 = vpop.f32.mrf.mxu0
        %v1148 = vadd.f32 0.0, %v1147
        %v1149 = vpop.f32.mrf.mxu0
        %1150 = vdwg.mxu0
        %1151 = vmatpush.bf16.msra.mxu0 %v899
        %1152 = vmatpush.bf16.msra.mxu0 %v883
        %1153 = vmatpush.bf16.msra.mxu0 %v867
        %1154 = vmatpush.bf16.msra.mxu0 %v851
        %1155 = vmatpush.bf16.msra.mxu0 %v835
        %1156 = vmatpush.bf16.msra.mxu0 %v819
        %1157 = vmatpush.bf16.msra.mxu0 %v803
        %1158 = vmatpush.bf16.msra.mxu0 %v787
        %1159 = vmatmul.bf16.gmra.mxu0 %v393
        %v1160 = vpop.f32.mrf.mxu0
        %v1161 = vadd.f32 0.0, %v1160
        %v1162 = vpop.f32.mrf.mxu0
        %1163 = vdwg.mxu0
        %1164 = vmatpush.bf16.msra.mxu0 %v900
        %1165 = vmatpush.bf16.msra.mxu0 %v884
        %1166 = vmatpush.bf16.msra.mxu0 %v868
        %1167 = vmatpush.bf16.msra.mxu0 %v852
        %1168 = vmatpush.bf16.msra.mxu0 %v836
        %1169 = vmatpush.bf16.msra.mxu0 %v820
        %1170 = vmatpush.bf16.msra.mxu0 %v804
        %1171 = vmatpush.bf16.msra.mxu0 %v788
        %1172 = vmatmul.bf16.gmra.mxu0 %v393
        %v1173 = vpop.f32.mrf.mxu0
        %v1174 = vadd.f32 0.0, %v1173
        %v1175 = vpop.f32.mrf.mxu0
        %1176 = vdwg.mxu0
        %1177 = vmatpush.bf16.msra.mxu0 %v901
        %1178 = vmatpush.bf16.msra.mxu0 %v885
        %1179 = vmatpush.bf16.msra.mxu0 %v869
        %1180 = vmatpush.bf16.msra.mxu0 %v853
        %1181 = vmatpush.bf16.msra.mxu0 %v837
        %1182 = vmatpush.bf16.msra.mxu0 %v821
        %1183 = vmatpush.bf16.msra.mxu0 %v805
        %1184 = vmatpush.bf16.msra.mxu0 %v789
        %1185 = vmatmul.bf16.gmra.mxu0 %v393
        %v1186 = vpop.f32.mrf.mxu0
        %v1187 = vadd.f32 0.0, %v1186
        %v1188 = vpop.f32.mrf.mxu0
        %1189 = vdwg.mxu0
        %1190 = vmatpush.bf16.msra.mxu0 %v902
        %1191 = vmatpush.bf16.msra.mxu0 %v886
        %1192 = vmatpush.bf16.msra.mxu0 %v870
        %1193 = vmatpush.bf16.msra.mxu0 %v854
        %1194 = vmatpush.bf16.msra.mxu0 %v838
        %1195 = vmatpush.bf16.msra.mxu0 %v822
        %1196 = vmatpush.bf16.msra.mxu0 %v806
        %1197 = vmatpush.bf16.msra.mxu0 %v790
        %1198 = vmatmul.bf16.gmra.mxu0 %v393
        %v1199 = vpop.f32.mrf.mxu0
        %v1200 = vadd.f32 0.0, %v1199
        %v1201 = vpop.f32.mrf.mxu0
        %1202 = vdwg.mxu0
        %1203 = vmatpush.bf16.msra.mxu0 %v903
        %1204 = vmatpush.bf16.msra.mxu0 %v887
        %1205 = vmatpush.bf16.msra.mxu0 %v871
        %1206 = vmatpush.bf16.msra.mxu0 %v855
        %1207 = vmatpush.bf16.msra.mxu0 %v839
        %1208 = vmatpush.bf16.msra.mxu0 %v823
        %1209 = vmatpush.bf16.msra.mxu0 %v807
        %1210 = vmatpush.bf16.msra.mxu0 %v791
        %1211 = vmatmul.bf16.gmra.mxu0 %v393
        %v1212 = vpop.f32.mrf.mxu0
        %v1213 = vadd.f32 0.0, %v1212
        %v1214 = vpop.f32.mrf.mxu0
        %1215 = vdwg.mxu0
        %1216 = vmatpush.bf16.msra.mxu0 %v904
        %1217 = vmatpush.bf16.msra.mxu0 %v888
        %1218 = vmatpush.bf16.msra.mxu0 %v872
        %1219 = vmatpush.bf16.msra.mxu0 %v856
        %1220 = vmatpush.bf16.msra.mxu0 %v840
        %1221 = vmatpush.bf16.msra.mxu0 %v824
        %1222 = vmatpush.bf16.msra.mxu0 %v808
        %1223 = vmatpush.bf16.msra.mxu0 %v792
        %1224 = vmatmul.bf16.gmra.mxu0 %v393
        %v1225 = vpop.f32.mrf.mxu0
        %v1226 = vadd.f32 0.0, %v1225
        %v1227 = vpop.f32.mrf.mxu0
        %1228 = vdwg.mxu0
        %1229 = vmatpush.bf16.msra.mxu0 %v905
        %1230 = vmatpush.bf16.msra.mxu0 %v889
        %1231 = vmatpush.bf16.msra.mxu0 %v873
        %1232 = vmatpush.bf16.msra.mxu0 %v857
        %1233 = vmatpush.bf16.msra.mxu0 %v841
        %1234 = vmatpush.bf16.msra.mxu0 %v825
        %1235 = vmatpush.bf16.msra.mxu0 %v809
        %1236 = vmatpush.bf16.msra.mxu0 %v793
        %1237 = vmatmul.bf16.gmra.mxu0 %v393
        %v1238 = vpop.f32.mrf.mxu0
        %v1239 = vadd.f32 0.0, %v1238
        %v1240 = vpop.f32.mrf.mxu0
        %1241 = vdwg.mxu0
        %1242 = vmatpush.bf16.msra.mxu0 %v890
        %1243 = vmatpush.bf16.msra.mxu0 %v874
        %1244 = vmatpush.bf16.msra.mxu0 %v858
        %1245 = vmatpush.bf16.msra.mxu0 %v842
        %1246 = vmatpush.bf16.msra.mxu0 %v826
        %1247 = vmatpush.bf16.msra.mxu0 %v810
        %1248 = vmatpush.bf16.msra.mxu0 %v794
        %1249 = vmatpush.bf16.msra.mxu0 %v778
        %1250 = vmatmul.bf16.gmra.mxu0 %v390
        %v1251 = vpop.f32.mrf.mxu0
        %v1252 = vadd.f32 %v1044, %v1251
        %v1253 = vpop.f32.mrf.mxu0
        %1254 = vdwg.mxu0
        %1255 = vmatpush.bf16.msra.mxu0 %v891
        %1256 = vmatpush.bf16.msra.mxu0 %v875
        %1257 = vmatpush.bf16.msra.mxu0 %v859
        %1258 = vmatpush.bf16.msra.mxu0 %v843
        %1259 = vmatpush.bf16.msra.mxu0 %v827
        %1260 = vmatpush.bf16.msra.mxu0 %v811
        %1261 = vmatpush.bf16.msra.mxu0 %v795
        %1262 = vmatpush.bf16.msra.mxu0 %v779
        %1263 = vmatmul.bf16.gmra.mxu0 %v390
        %v1264 = vpop.f32.mrf.mxu0
        %v1265 = vadd.f32 %v1057, %v1264
        %v1266 = vpop.f32.mrf.mxu0
        %1267 = vdwg.mxu0
        %1268 = vmatpush.bf16.msra.mxu0 %v892
        %1269 = vmatpush.bf16.msra.mxu0 %v876
        %1270 = vmatpush.bf16.msra.mxu0 %v860
        %1271 = vmatpush.bf16.msra.mxu0 %v844
        %1272 = vmatpush.bf16.msra.mxu0 %v828
        %1273 = vmatpush.bf16.msra.mxu0 %v812
        %1274 = vmatpush.bf16.msra.mxu0 %v796
        %1275 = vmatpush.bf16.msra.mxu0 %v780
        %1276 = vmatmul.bf16.gmra.mxu0 %v390
        %v1277 = vpop.f32.mrf.mxu0
        %v1278 = vadd.f32 %v1070, %v1277
        %v1279 = vpop.f32.mrf.mxu0
        %1280 = vdwg.mxu0
        %1281 = vmatpush.bf16.msra.mxu0 %v893
        %1282 = vmatpush.bf16.msra.mxu0 %v877
        %1283 = vmatpush.bf16.msra.mxu0 %v861
        %1284 = vmatpush.bf16.msra.mxu0 %v845
        %1285 = vmatpush.bf16.msra.mxu0 %v829
        %1286 = vmatpush.bf16.msra.mxu0 %v813
        %1287 = vmatpush.bf16.msra.mxu0 %v797
        %1288 = vmatpush.bf16.msra.mxu0 %v781
        %1289 = vmatmul.bf16.gmra.mxu0 %v390
        %v1290 = vpop.f32.mrf.mxu0
        %v1291 = vadd.f32 %v1083, %v1290
        %v1292 = vpop.f32.mrf.mxu0
        %1293 = vdwg.mxu0
        %1294 = vmatpush.bf16.msra.mxu0 %v894
        %1295 = vmatpush.bf16.msra.mxu0 %v878
        %1296 = vmatpush.bf16.msra.mxu0 %v862
        %1297 = vmatpush.bf16.msra.mxu0 %v846
        %1298 = vmatpush.bf16.msra.mxu0 %v830
        %1299 = vmatpush.bf16.msra.mxu0 %v814
        %1300 = vmatpush.bf16.msra.mxu0 %v798
        %1301 = vmatpush.bf16.msra.mxu0 %v782
        %1302 = vmatmul.bf16.gmra.mxu0 %v390
        %v1303 = vpop.f32.mrf.mxu0
        %v1304 = vadd.f32 %v1096, %v1303
        %v1305 = vpop.f32.mrf.mxu0
        %1306 = vdwg.mxu0
        %1307 = vmatpush.bf16.msra.mxu0 %v895
        %1308 = vmatpush.bf16.msra.mxu0 %v879
        %1309 = vmatpush.bf16.msra.mxu0 %v863
        %1310 = vmatpush.bf16.msra.mxu0 %v847
        %1311 = vmatpush.bf16.msra.mxu0 %v831
        %1312 = vmatpush.bf16.msra.mxu0 %v815
        %1313 = vmatpush.bf16.msra.mxu0 %v799
        %1314 = vmatpush.bf16.msra.mxu0 %v783
        %1315 = vmatmul.bf16.gmra.mxu0 %v390
        %v1316 = vpop.f32.mrf.mxu0
        %v1317 = vadd.f32 %v1109, %v1316
        %v1318 = vpop.f32.mrf.mxu0
        %1319 = vdwg.mxu0
        %1320 = vmatpush.bf16.msra.mxu0 %v896
        %1321 = vmatpush.bf16.msra.mxu0 %v880
        %1322 = vmatpush.bf16.msra.mxu0 %v864
        %1323 = vmatpush.bf16.msra.mxu0 %v848
        %1324 = vmatpush.bf16.msra.mxu0 %v832
        %1325 = vmatpush.bf16.msra.mxu0 %v816
        %1326 = vmatpush.bf16.msra.mxu0 %v800
        %1327 = vmatpush.bf16.msra.mxu0 %v784
        %1328 = vmatmul.bf16.gmra.mxu0 %v390
        %v1329 = vpop.f32.mrf.mxu0
        %v1330 = vadd.f32 %v1122, %v1329
        %v1331 = vpop.f32.mrf.mxu0
        %1332 = vdwg.mxu0
        %1333 = vmatpush.bf16.msra.mxu0 %v897
        %1334 = vmatpush.bf16.msra.mxu0 %v881
        %1335 = vmatpush.bf16.msra.mxu0 %v865
        %1336 = vmatpush.bf16.msra.mxu0 %v849
        %1337 = vmatpush.bf16.msra.mxu0 %v833
        %1338 = vmatpush.bf16.msra.mxu0 %v817
        %1339 = vmatpush.bf16.msra.mxu0 %v801
        %1340 = vmatpush.bf16.msra.mxu0 %v785
        %1341 = vmatmul.bf16.gmra.mxu0 %v390
        %v1342 = vpop.f32.mrf.mxu0
        %v1343 = vadd.f32 %v1135, %v1342
        %v1344 = vpop.f32.mrf.mxu0
        %1345 = vdwg.mxu0
        %1346 = vmatpush.bf16.msra.mxu0 %v898
        %1347 = vmatpush.bf16.msra.mxu0 %v882
        %1348 = vmatpush.bf16.msra.mxu0 %v866
        %1349 = vmatpush.bf16.msra.mxu0 %v850
        %1350 = vmatpush.bf16.msra.mxu0 %v834
        %1351 = vmatpush.bf16.msra.mxu0 %v818
        %1352 = vmatpush.bf16.msra.mxu0 %v802
        %1353 = vmatpush.bf16.msra.mxu0 %v786
        %1354 = vmatmul.bf16.gmra.mxu0 %v390
        %v1355 = vpop.f32.mrf.mxu0
        %v1356 = vadd.f32 %v1148, %v1355
        %v1357 = vpop.f32.mrf.mxu0
        %1358 = vdwg.mxu0
        %1359 = vmatpush.bf16.msra.mxu0 %v899
        %1360 = vmatpush.bf16.msra.mxu0 %v883
        %1361 = vmatpush.bf16.msra.mxu0 %v867
        %1362 = vmatpush.bf16.msra.mxu0 %v851
        %1363 = vmatpush.bf16.msra.mxu0 %v835
        %1364 = vmatpush.bf16.msra.mxu0 %v819
        %1365 = vmatpush.bf16.msra.mxu0 %v803
        %1366 = vmatpush.bf16.msra.mxu0 %v787
        %1367 = vmatmul.bf16.gmra.mxu0 %v390
        %v1368 = vpop.f32.mrf.mxu0
        %v1369 = vadd.f32 %v1161, %v1368
        %v1370 = vpop.f32.mrf.mxu0
        %1371 = vdwg.mxu0
        %1372 = vmatpush.bf16.msra.mxu0 %v900
        %1373 = vmatpush.bf16.msra.mxu0 %v884
        %1374 = vmatpush.bf16.msra.mxu0 %v868
        %1375 = vmatpush.bf16.msra.mxu0 %v852
        %1376 = vmatpush.bf16.msra.mxu0 %v836
        %1377 = vmatpush.bf16.msra.mxu0 %v820
        %1378 = vmatpush.bf16.msra.mxu0 %v804
        %1379 = vmatpush.bf16.msra.mxu0 %v788
        %1380 = vmatmul.bf16.gmra.mxu0 %v390
        %v1381 = vpop.f32.mrf.mxu0
        %v1382 = vadd.f32 %v1174, %v1381
        %v1383 = vpop.f32.mrf.mxu0
        %1384 = vdwg.mxu0
        %1385 = vmatpush.bf16.msra.mxu0 %v901
        %1386 = vmatpush.bf16.msra.mxu0 %v885
        %1387 = vmatpush.bf16.msra.mxu0 %v869
        %1388 = vmatpush.bf16.msra.mxu0 %v853
        %1389 = vmatpush.bf16.msra.mxu0 %v837
        %1390 = vmatpush.bf16.msra.mxu0 %v821
        %1391 = vmatpush.bf16.msra.mxu0 %v805
        %1392 = vmatpush.bf16.msra.mxu0 %v789
        %1393 = vmatmul.bf16.gmra.mxu0 %v390
        %v1394 = vpop.f32.mrf.mxu0
        %v1395 = vadd.f32 %v1187, %v1394
        %v1396 = vpop.f32.mrf.mxu0
        %1397 = vdwg.mxu0
        %1398 = vmatpush.bf16.msra.mxu0 %v902
        %1399 = vmatpush.bf16.msra.mxu0 %v886
        %1400 = vmatpush.bf16.msra.mxu0 %v870
        %1401 = vmatpush.bf16.msra.mxu0 %v854
        %1402 = vmatpush.bf16.msra.mxu0 %v838
        %1403 = vmatpush.bf16.msra.mxu0 %v822
        %1404 = vmatpush.bf16.msra.mxu0 %v806
        %1405 = vmatpush.bf16.msra.mxu0 %v790
        %1406 = vmatmul.bf16.gmra.mxu0 %v390
        %v1407 = vpop.f32.mrf.mxu0
        %v1408 = vadd.f32 %v1200, %v1407
        %v1409 = vpop.f32.mrf.mxu0
        %1410 = vdwg.mxu0
        %1411 = vmatpush.bf16.msra.mxu0 %v903
        %1412 = vmatpush.bf16.msra.mxu0 %v887
        %1413 = vmatpush.bf16.msra.mxu0 %v871
        %1414 = vmatpush.bf16.msra.mxu0 %v855
        %1415 = vmatpush.bf16.msra.mxu0 %v839
        %1416 = vmatpush.bf16.msra.mxu0 %v823
        %1417 = vmatpush.bf16.msra.mxu0 %v807
        %1418 = vmatpush.bf16.msra.mxu0 %v791
        %1419 = vmatmul.bf16.gmra.mxu0 %v390
        %v1420 = vpop.f32.mrf.mxu0
        %v1421 = vadd.f32 %v1213, %v1420
        %v1422 = vpop.f32.mrf.mxu0
        %1423 = vdwg.mxu0
        %1424 = vmatpush.bf16.msra.mxu0 %v904
        %1425 = vmatpush.bf16.msra.mxu0 %v888
        %1426 = vmatpush.bf16.msra.mxu0 %v872
        %1427 = vmatpush.bf16.msra.mxu0 %v856
        %1428 = vmatpush.bf16.msra.mxu0 %v840
        %1429 = vmatpush.bf16.msra.mxu0 %v824
        %1430 = vmatpush.bf16.msra.mxu0 %v808
        %1431 = vmatpush.bf16.msra.mxu0 %v792
        %1432 = vmatmul.bf16.gmra.mxu0 %v390
        %v1433 = vpop.f32.mrf.mxu0
        %v1434 = vadd.f32 %v1226, %v1433
        %v1435 = vpop.f32.mrf.mxu0
        %1436 = vdwg.mxu0
        %1437 = vmatpush.bf16.msra.mxu0 %v905
        %1438 = vmatpush.bf16.msra.mxu0 %v889
        %1439 = vmatpush.bf16.msra.mxu0 %v873
        %1440 = vmatpush.bf16.msra.mxu0 %v857
        %1441 = vmatpush.bf16.msra.mxu0 %v841
        %1442 = vmatpush.bf16.msra.mxu0 %v825
        %1443 = vmatpush.bf16.msra.mxu0 %v809
        %1444 = vmatpush.bf16.msra.mxu0 %v793
        %1445 = vmatmul.bf16.gmra.mxu0 %v390
        %v1446 = vpop.f32.mrf.mxu0
        %v1447 = vadd.f32 %v1239, %v1446
        %v1448 = vpop.f32.mrf.mxu0
        %1449 = vdwg.mxu0
        %v1450 = vunpack.c.l.bf16 %v393
        %v1451 = vsub.f32 %v392, %v1450
        %v1452 = vpack.c.bf16 %v1451, %v1451
        %1453 = vmatpush.bf16.msra.mxu0 %v890
        %1454 = vmatpush.bf16.msra.mxu0 %v874
        %1455 = vmatpush.bf16.msra.mxu0 %v858
        %1456 = vmatpush.bf16.msra.mxu0 %v842
        %1457 = vmatpush.bf16.msra.mxu0 %v826
        %1458 = vmatpush.bf16.msra.mxu0 %v810
        %1459 = vmatpush.bf16.msra.mxu0 %v794
        %1460 = vmatpush.bf16.msra.mxu0 %v778
        %1461 = vmatmul.bf16.gmra.mxu0 %v1452
        %v1462 = vpop.f32.mrf.mxu0
        %v1463 = vadd.f32 0.0, %v1462
        %v1464 = vpop.f32.mrf.mxu0
        %1465 = vdwg.mxu0
        %1466 = vmatpush.bf16.msra.mxu0 %v891
        %1467 = vmatpush.bf16.msra.mxu0 %v875
        %1468 = vmatpush.bf16.msra.mxu0 %v859
        %1469 = vmatpush.bf16.msra.mxu0 %v843
        %1470 = vmatpush.bf16.msra.mxu0 %v827
        %1471 = vmatpush.bf16.msra.mxu0 %v811
        %1472 = vmatpush.bf16.msra.mxu0 %v795
        %1473 = vmatpush.bf16.msra.mxu0 %v779
        %1474 = vmatmul.bf16.gmra.mxu0 %v1452
        %v1475 = vpop.f32.mrf.mxu0
        %v1476 = vadd.f32 0.0, %v1475
        %v1477 = vpop.f32.mrf.mxu0
        %1478 = vdwg.mxu0
        %1479 = vmatpush.bf16.msra.mxu0 %v892
        %1480 = vmatpush.bf16.msra.mxu0 %v876
        %1481 = vmatpush.bf16.msra.mxu0 %v860
        %1482 = vmatpush.bf16.msra.mxu0 %v844
        %1483 = vmatpush.bf16.msra.mxu0 %v828
        %1484 = vmatpush.bf16.msra.mxu0 %v812
        %1485 = vmatpush.bf16.msra.mxu0 %v796
        %1486 = vmatpush.bf16.msra.mxu0 %v780
        %1487 = vmatmul.bf16.gmra.mxu0 %v1452
        %v1488 = vpop.f32.mrf.mxu0
        %v1489 = vadd.f32 0.0, %v1488
        %v1490 = vpop.f32.mrf.mxu0
        %1491 = vdwg.mxu0
        %1492 = vmatpush.bf16.msra.mxu0 %v893
        %1493 = vmatpush.bf16.msra.mxu0 %v877
        %1494 = vmatpush.bf16.msra.mxu0 %v861
        %1495 = vmatpush.bf16.msra.mxu0 %v845
        %1496 = vmatpush.bf16.msra.mxu0 %v829
        %1497 = vmatpush.bf16.msra.mxu0 %v813
        %1498 = vmatpush.bf16.msra.mxu0 %v797
        %1499 = vmatpush.bf16.msra.mxu0 %v781
        %1500 = vmatmul.bf16.gmra.mxu0 %v1452
        %v1501 = vpop.f32.mrf.mxu0
        %v1502 = vadd.f32 0.0, %v1501
        %v1503 = vpop.f32.mrf.mxu0
        %1504 = vdwg.mxu0
        %1505 = vmatpush.bf16.msra.mxu0 %v894
        %1506 = vmatpush.bf16.msra.mxu0 %v878
        %1507 = vmatpush.bf16.msra.mxu0 %v862
        %1508 = vmatpush.bf16.msra.mxu0 %v846
        %1509 = vmatpush.bf16.msra.mxu0 %v830
        %1510 = vmatpush.bf16.msra.mxu0 %v814
        %1511 = vmatpush.bf16.msra.mxu0 %v798
        %1512 = vmatpush.bf16.msra.mxu0 %v782
        %1513 = vmatmul.bf16.gmra.mxu0 %v1452
        %v1514 = vpop.f32.mrf.mxu0
        %v1515 = vadd.f32 0.0, %v1514
        %v1516 = vpop.f32.mrf.mxu0
        %1517 = vdwg.mxu0
        %1518 = vmatpush.bf16.msra.mxu0 %v895
        %1519 = vmatpush.bf16.msra.mxu0 %v879
        %1520 = vmatpush.bf16.msra.mxu0 %v863
        %1521 = vmatpush.bf16.msra.mxu0 %v847
        %1522 = vmatpush.bf16.msra.mxu0 %v831
        %1523 = vmatpush.bf16.msra.mxu0 %v815
        %1524 = vmatpush.bf16.msra.mxu0 %v799
        %1525 = vmatpush.bf16.msra.mxu0 %v783
        %1526 = vmatmul.bf16.gmra.mxu0 %v1452
        %v1527 = vpop.f32.mrf.mxu0
        %v1528 = vadd.f32 0.0, %v1527
        %v1529 = vpop.f32.mrf.mxu0
        %1530 = vdwg.mxu0
        %1531 = vmatpush.bf16.msra.mxu0 %v896
        %1532 = vmatpush.bf16.msra.mxu0 %v880
        %1533 = vmatpush.bf16.msra.mxu0 %v864
        %1534 = vmatpush.bf16.msra.mxu0 %v848
        %1535 = vmatpush.bf16.msra.mxu0 %v832
        %1536 = vmatpush.bf16.msra.mxu0 %v816
        %1537 = vmatpush.bf16.msra.mxu0 %v800
        %1538 = vmatpush.bf16.msra.mxu0 %v784
        %1539 = vmatmul.bf16.gmra.mxu0 %v1452
        %v1540 = vpop.f32.mrf.mxu0
        %v1541 = vadd.f32 0.0, %v1540
        %v1542 = vpop.f32.mrf.mxu0
        %1543 = vdwg.mxu0
        %1544 = vmatpush.bf16.msra.mxu0 %v897
        %1545 = vmatpush.bf16.msra.mxu0 %v881
        %1546 = vmatpush.bf16.msra.mxu0 %v865
        %1547 = vmatpush.bf16.msra.mxu0 %v849
        %1548 = vmatpush.bf16.msra.mxu0 %v833
        %1549 = vmatpush.bf16.msra.mxu0 %v817
        %1550 = vmatpush.bf16.msra.mxu0 %v801
        %1551 = vmatpush.bf16.msra.mxu0 %v785
        %1552 = vmatmul.bf16.gmra.mxu0 %v1452
        %v1553 = vpop.f32.mrf.mxu0
        %v1554 = vadd.f32 0.0, %v1553
        %v1555 = vpop.f32.mrf.mxu0
        %1556 = vdwg.mxu0
        %1557 = vmatpush.bf16.msra.mxu0 %v898
        %1558 = vmatpush.bf16.msra.mxu0 %v882
        %1559 = vmatpush.bf16.msra.mxu0 %v866
        %1560 = vmatpush.bf16.msra.mxu0 %v850
        %1561 = vmatpush.bf16.msra.mxu0 %v834
        %1562 = vmatpush.bf16.msra.mxu0 %v818
        %1563 = vmatpush.bf16.msra.mxu0 %v802
        %1564 = vmatpush.bf16.msra.mxu0 %v786
        %1565 = vmatmul.bf16.gmra.mxu0 %v1452
        %v1566 = vpop.f32.mrf.mxu0
        %v1567 = vadd.f32 0.0, %v1566
        %v1568 = vpop.f32.mrf.mxu0
        %1569 = vdwg.mxu0
        %1570 = vmatpush.bf16.msra.mxu0 %v899
        %1571 = vmatpush.bf16.msra.mxu0 %v883
        %1572 = vmatpush.bf16.msra.mxu0 %v867
        %1573 = vmatpush.bf16.msra.mxu0 %v851
        %1574 = vmatpush.bf16.msra.mxu0 %v835
        %1575 = vmatpush.bf16.msra.mxu0 %v819
        %1576 = vmatpush.bf16.msra.mxu0 %v803
        %1577 = vmatpush.bf16.msra.mxu0 %v787
        %1578 = vmatmul.bf16.gmra.mxu0 %v1452
        %v1579 = vpop.f32.mrf.mxu0
        %v1580 = vadd.f32 0.0, %v1579
        %v1581 = vpop.f32.mrf.mxu0
        %1582 = vdwg.mxu0
        %1583 = vmatpush.bf16.msra.mxu0 %v900
        %1584 = vmatpush.bf16.msra.mxu0 %v884
        %1585 = vmatpush.bf16.msra.mxu0 %v868
        %1586 = vmatpush.bf16.msra.mxu0 %v852
        %1587 = vmatpush.bf16.msra.mxu0 %v836
        %1588 = vmatpush.bf16.msra.mxu0 %v820
        %1589 = vmatpush.bf16.msra.mxu0 %v804
        %1590 = vmatpush.bf16.msra.mxu0 %v788
        %1591 = vmatmul.bf16.gmra.mxu0 %v1452
        %v1592 = vpop.f32.mrf.mxu0
        %v1593 = vadd.f32 0.0, %v1592
        %v1594 = vpop.f32.mrf.mxu0
        %1595 = vdwg.mxu0
        %1596 = vmatpush.bf16.msra.mxu0 %v901
        %1597 = vmatpush.bf16.msra.mxu0 %v885
        %1598 = vmatpush.bf16.msra.mxu0 %v869
        %1599 = vmatpush.bf16.msra.mxu0 %v853
        %1600 = vmatpush.bf16.msra.mxu0 %v837
        %1601 = vmatpush.bf16.msra.mxu0 %v821
        %1602 = vmatpush.bf16.msra.mxu0 %v805
        %1603 = vmatpush.bf16.msra.mxu0 %v789
        %1604 = vmatmul.bf16.gmra.mxu0 %v1452
        %v1605 = vpop.f32.mrf.mxu0
        %v1606 = vadd.f32 0.0, %v1605
        %v1607 = vpop.f32.mrf.mxu0
        %1608 = vdwg.mxu0
        %1609 = vmatpush.bf16.msra.mxu0 %v902
        %1610 = vmatpush.bf16.msra.mxu0 %v886
        %1611 = vmatpush.bf16.msra.mxu0 %v870
        %1612 = vmatpush.bf16.msra.mxu0 %v854
        %1613 = vmatpush.bf16.msra.mxu0 %v838
        %1614 = vmatpush.bf16.msra.mxu0 %v822
        %1615 = vmatpush.bf16.msra.mxu0 %v806
        %1616 = vmatpush.bf16.msra.mxu0 %v790
        %1617 = vmatmul.bf16.gmra.mxu0 %v1452
        %v1618 = vpop.f32.mrf.mxu0
        %v1619 = vadd.f32 0.0, %v1618
        %v1620 = vpop.f32.mrf.mxu0
        %1621 = vdwg.mxu0
        %1622 = vmatpush.bf16.msra.mxu0 %v903
        %1623 = vmatpush.bf16.msra.mxu0 %v887
        %1624 = vmatpush.bf16.msra.mxu0 %v871
        %1625 = vmatpush.bf16.msra.mxu0 %v855
        %1626 = vmatpush.bf16.msra.mxu0 %v839
        %1627 = vmatpush.bf16.msra.mxu0 %v823
        %1628 = vmatpush.bf16.msra.mxu0 %v807
        %1629 = vmatpush.bf16.msra.mxu0 %v791
        %1630 = vmatmul.bf16.gmra.mxu0 %v1452
        %v1631 = vpop.f32.mrf.mxu0
        %v1632 = vadd.f32 0.0, %v1631
        %v1633 = vpop.f32.mrf.mxu0
        %1634 = vdwg.mxu0
        %1635 = vmatpush.bf16.msra.mxu0 %v904
        %1636 = vmatpush.bf16.msra.mxu0 %v888
        %1637 = vmatpush.bf16.msra.mxu0 %v872
        %1638 = vmatpush.bf16.msra.mxu0 %v856
        %1639 = vmatpush.bf16.msra.mxu0 %v840
        %1640 = vmatpush.bf16.msra.mxu0 %v824
        %1641 = vmatpush.bf16.msra.mxu0 %v808
        %1642 = vmatpush.bf16.msra.mxu0 %v792
        %1643 = vmatmul.bf16.gmra.mxu0 %v1452
        %v1644 = vpop.f32.mrf.mxu0
        %v1645 = vadd.f32 0.0, %v1644
        %v1646 = vpop.f32.mrf.mxu0
        %1647 = vdwg.mxu0
        %1648 = vmatpush.bf16.msra.mxu0 %v905
        %1649 = vmatpush.bf16.msra.mxu0 %v889
        %1650 = vmatpush.bf16.msra.mxu0 %v873
        %1651 = vmatpush.bf16.msra.mxu0 %v857
        %1652 = vmatpush.bf16.msra.mxu0 %v841
        %1653 = vmatpush.bf16.msra.mxu0 %v825
        %1654 = vmatpush.bf16.msra.mxu0 %v809
        %1655 = vmatpush.bf16.msra.mxu0 %v793
        %1656 = vmatmul.bf16.gmra.mxu0 %v1452
        %v1657 = vpop.f32.mrf.mxu0
        %v1658 = vadd.f32 0.0, %v1657
        %v1659 = vpop.f32.mrf.mxu0
        %1660 = vdwg.mxu0
        %v1661 = vadd.f32 %v1252, %v1463
        %v1662 = vadd.f32 %v1265, %v1476
        %v1663 = vadd.f32 %v1278, %v1489
        %v1664 = vadd.f32 %v1291, %v1502
        %v1665 = vadd.f32 %v1304, %v1515
        %v1666 = vadd.f32 %v1317, %v1528
        %v1667 = vadd.f32 %v1330, %v1541
        %v1668 = vadd.f32 %v1343, %v1554
        %v1669 = vadd.f32 %v1356, %v1567
        %v1670 = vadd.f32 %v1369, %v1580
        %v1671 = vadd.f32 %v1382, %v1593
        %v1672 = vadd.f32 %v1395, %v1606
        %v1673 = vadd.f32 %v1408, %v1619
        %v1674 = vadd.f32 %v1421, %v1632
        %v1675 = vadd.f32 %v1434, %v1645
        %v1676 = vadd.f32 %v1447, %v1658
        %v1677 = vld [vmem:[#allocation7] sm:$0xff]
        %v1678 = vld [vmem:[#allocation7 + $0x8] sm:$0xff]
        %v1681 = vperm.slane %v1677, 0
        %v1682 = vperm.slane %v1677, 1
        %v1683 = vperm.slane %v1677, 2
        %v1684 = vperm.slane %v1677, 3
        %v1685 = vperm.slane %v1677, 4
        %v1686 = vperm.slane %v1677, 5
        %v1687 = vperm.slane %v1677, 6
        %v1688 = vperm.slane %v1677, 7
        %v1689 = vperm.slane %v1678, 0
        %v1690 = vperm.slane %v1678, 1
        %v1691 = vperm.slane %v1678, 2
        %v1692 = vperm.slane %v1678, 3
        %v1693 = vperm.slane %v1678, 4
        %v1694 = vperm.slane %v1678, 5
        %v1695 = vperm.slane %v1678, 6
        %v1696 = vperm.slane %v1678, 7
        %v1713 = vsub.f32 %v1661, %v1681
        %v1714 = vsub.f32 %v1662, %v1682
        %v1715 = vsub.f32 %v1663, %v1683
        %v1716 = vsub.f32 %v1664, %v1684
        %v1717 = vsub.f32 %v1665, %v1685
        %v1718 = vsub.f32 %v1666, %v1686
        %v1719 = vsub.f32 %v1667, %v1687
        %v1720 = vsub.f32 %v1668, %v1688
        %v1721 = vsub.f32 %v1669, %v1689
        %v1722 = vsub.f32 %v1670, %v1690
        %v1723 = vsub.f32 %v1671, %v1691
        %v1724 = vsub.f32 %v1672, %v1692
        %v1725 = vsub.f32 %v1673, %v1693
        %v1726 = vsub.f32 %v1674, %v1694
        %v1727 = vsub.f32 %v1675, %v1695
        %v1728 = vsub.f32 %v1676, %v1696
        %v1729 = vld [vmem:[#allocation8] sm:$0xff]
        %v1730 = vld [vmem:[#allocation8 + $0x8] sm:$0xff]
        %v1731 = vmul.f32 %v1713, %v1713
        %v1732 = vmul.f32 %v1714, %v1714
        %v1733 = vmul.f32 %v1715, %v1715
        %v1734 = vmul.f32 %v1716, %v1716
        %v1735 = vmul.f32 %v1717, %v1717
        %v1736 = vmul.f32 %v1718, %v1718
        %v1737 = vmul.f32 %v1719, %v1719
        %v1738 = vmul.f32 %v1720, %v1720
        %v1739 = vmul.f32 %v1721, %v1721
        %v1740 = vmul.f32 %v1722, %v1722
        %v1741 = vmul.f32 %v1723, %v1723
        %v1742 = vmul.f32 %v1724, %v1724
        %v1743 = vmul.f32 %v1725, %v1725
        %v1744 = vmul.f32 %v1726, %v1726
        %v1745 = vmul.f32 %v1727, %v1727
        %v1746 = vmul.f32 %v1728, %v1728
        %v1749 = vperm.slane %v1729, 0
        %v1750 = vperm.slane %v1729, 1
        %v1751 = vperm.slane %v1729, 2
        %v1752 = vperm.slane %v1729, 3
        %v1753 = vperm.slane %v1729, 4
        %v1754 = vperm.slane %v1729, 5
        %v1755 = vperm.slane %v1729, 6
        %v1756 = vperm.slane %v1729, 7
        %v1757 = vperm.slane %v1730, 0
        %v1758 = vperm.slane %v1730, 1
        %v1759 = vperm.slane %v1730, 2
        %v1760 = vperm.slane %v1730, 3
        %v1761 = vperm.slane %v1730, 4
        %v1762 = vperm.slane %v1730, 5
        %v1763 = vperm.slane %v1730, 6
        %v1764 = vperm.slane %v1730, 7
        %v1781 = vmul.f32 %v1749, %v1731
        %v1782 = vmul.f32 %v1750, %v1732
        %v1783 = vmul.f32 %v1751, %v1733
        %v1784 = vmul.f32 %v1752, %v1734
        %v1785 = vmul.f32 %v1753, %v1735
        %v1786 = vmul.f32 %v1754, %v1736
        %v1787 = vmul.f32 %v1755, %v1737
        %v1788 = vmul.f32 %v1756, %v1738
        %v1789 = vmul.f32 %v1757, %v1739
        %v1790 = vmul.f32 %v1758, %v1740
        %v1791 = vmul.f32 %v1759, %v1741
        %v1792 = vmul.f32 %v1760, %v1742
        %v1793 = vmul.f32 %v1761, %v1743
        %v1794 = vmul.f32 %v1762, %v1744
        %v1795 = vmul.f32 %v1763, %v1745
        %v1796 = vmul.f32 %v1764, %v1746
        %v1797 = vmul.f32 %v1781, 1.442695
        %v1798 = vpow.pop %v1797
        %v1799 = vmul.f32 %v1782, 1.442695
        %v1800 = vpow.pop %v1799
        %v1801 = vmul.f32 %v1783, 1.442695
        %v1802 = vpow.pop %v1801
        %v1803 = vmul.f32 %v1784, 1.442695
        %v1804 = vpow.pop %v1803
        %v1805 = vmul.f32 %v1785, 1.442695
        %v1806 = vpow.pop %v1805
        %v1807 = vmul.f32 %v1786, 1.442695
        %v1808 = vpow.pop %v1807
        %v1809 = vmul.f32 %v1787, 1.442695
        %v1810 = vpow.pop %v1809
        %v1811 = vmul.f32 %v1788, 1.442695
        %v1812 = vpow.pop %v1811
        %v1813 = vmul.f32 %v1789, 1.442695
        %v1814 = vpow.pop %v1813
        %v1815 = vmul.f32 %v1790, 1.442695
        %v1816 = vpow.pop %v1815
        %v1817 = vmul.f32 %v1791, 1.442695
        %v1818 = vpow.pop %v1817
        %v1819 = vmul.f32 %v1792, 1.442695
        %v1820 = vpow.pop %v1819
        %v1821 = vmul.f32 %v1793, 1.442695
        %v1822 = vpow.pop %v1821
        %v1823 = vmul.f32 %v1794, 1.442695
        %v1824 = vpow.pop %v1823
        %v1825 = vmul.f32 %v1795, 1.442695
        %v1826 = vpow.pop %v1825
        %v1827 = vmul.f32 %v1796, 1.442695
        %v1828 = vpow.pop %v1827
        %1829 = vst [vmem:[%s260] sm:$0xff] %v1798
        %1830 = vst [vmem:[%s260 + $0x8] sm:$0xff] %v1800
        %1831 = vst [vmem:[%s260 + $0x10] sm:$0xff] %v1802
        %1832 = vst [vmem:[%s260 + $0x18] sm:$0xff] %v1804
        %1833 = vst [vmem:[%s260 + $0x20] sm:$0xff] %v1806
        %1834 = vst [vmem:[%s260 + $0x28] sm:$0xff] %v1808
        %1835 = vst [vmem:[%s260 + $0x30] sm:$0xff] %v1810
        %1836 = vst [vmem:[%s260 + $0x38] sm:$0xff] %v1812
        %1837 = vst [vmem:[%s260 + $0x40] sm:$0xff] %v1814
        %1838 = vst [vmem:[%s260 + $0x48] sm:$0xff] %v1816
        %1839 = vst [vmem:[%s260 + $0x50] sm:$0xff] %v1818
        %1840 = vst [vmem:[%s260 + $0x58] sm:$0xff] %v1820
        %1841 = vst [vmem:[%s260 + $0x60] sm:$0xff] %v1822
        %1842 = vst [vmem:[%s260 + $0x68] sm:$0xff] %v1824
        %1843 = vst [vmem:[%s260 + $0x70] sm:$0xff] %v1826
        %1844 = vst [vmem:[%s260 + $0x78] sm:$0xff] %v1828
        %s1845 = sand.u32 %s120, 1
        %s1846 = scalar_lea.sflag [#allocation4], %s1845
        %s1847 = sand.u32 %s120, 1
        %s1848 = smul.addr %s1847, 128
        %s1849 = scalar_lea.vmem [#allocation10], %s1848
        // Predicated region
        $region53: #{tpu_custom_call.1} parent=35 // pred_check
          %p1850 = pneg %p130
        $region54: #{tpu_custom_call.1} parent=35 // pred_check_branch
          %1852 = sbr.rel (%p1850) target = $region56
        $region55: #{tpu_custom_call.1} parent=35 // pred_region
          %1854 = vsyncadd %s1846, 0
          %s1855 = smul.addr %s23, 16
          %s1856 = smul.addr %s1855, 8
          %s1857 = scalar_lea.hbm %s4, %s1856
          %s1859 = sshll.u32 %s1849, 4
          %s1860 = int_to_ptr.vmem [resolvable:$true] %s1859
          %s1861 = sshll.u32 %s1857, 4
          %s1862 = int_to_ptr.hbm [resolvable:$true] %s1861
          %1864 = dma.vmem_to_hbm [thread:$0]  %s1860, 2048, %s1862, %s1846
        $region56: #{tpu_custom_call.1} parent=35 // pred_fallthru
          _
      $region36: #{tpu_custom_call.1} parent=5 // pred_fallthru
        _
      %p1865 = scmp.le.s32.totalorder 2, %s18
      // Predicated region
      $region57: #{tpu_custom_call.1} parent=5 // pred_check
        %p1866 = pneg %p1865
      $region58: #{tpu_custom_call.1} parent=5 // pred_check_branch
        %1868 = sbr.rel (%p1866) target = $region60
      $region59: #{tpu_custom_call.1} parent=5 // pred_region
        %s1869 = ssub.s32 %s18, 2
        // Predicated region
        $region61: #{tpu_custom_call.1} parent=59 // pred_check
          %p1870 = pneg %p136
        $region62: #{tpu_custom_call.1} parent=59 // pred_check_branch
          %1872 = sbr.rel (%p1870) target = $region64
        $region63: #{tpu_custom_call.1} parent=59 // pred_region
          %s1873 = sand.u32 %s121, 1
          %s1874 = scalar_lea.sflag [#allocation4], %s1873
          %s1875 = sand.u32 %s121, 1
          %s1876 = smul.addr %s1875, 128
          %s1877 = scalar_lea.vmem [#allocation10], %s1876
          %1879 = dma.done %s1874, 2048
        $region64: #{tpu_custom_call.1} parent=59 // pred_fallthru
          _
      $region60: #{tpu_custom_call.1} parent=5 // pred_fallthru
        _
    $region6: #{tpu_custom_call.1} parent=1 // loop_footer
      %s22 = sadd.s32 1, %s18
    $region7: #{tpu_custom_call.1} parent=1 // loop_footer_branch
      %17 = sbr.rel target = $region3
    $region8: #{tpu_custom_call.1} parent=1 // loop_exit
      _
    %1880 = vsyncpa [#allocation3], 1
    %s1881 = scalar_lea.sflag [#allocation3], 1
    %1882 = vsyncpa %s1881, 1
    %1883 = vsyncpa [#allocation6], 1
    %1884 = vsyncpa [#allocation9], 1
    %1885 = vsyncpa [#allocation4], 1
    %s1886 = scalar_lea.sflag [#allocation4], 1
    %1887 = vsyncpa %s1886, 1

</llo_original>
